<compile_context>
chip_gen: v7x
topology: tpu7x:2x2x1
jax: 0.10.0
libtpu: 0.0.40
codegen_flags: <defaults>
</compile_context>

<pallas_src>
import functools

import jax
import jax.numpy as jnp
from jax.experimental import pallas as pl
from jax.experimental.pallas import tpu as pltpu

LANE = 128
SUBLANE = 8


def _round_up(x, m):
    return (x + m - 1) // m * m


def _pick_tm(M):
    """Row-tile size: <=256, multiple of 8, >=2 grid steps when possible."""
    m8 = _round_up(M, SUBLANE)
    if m8 >= 512:
        return 256
    if m8 >= 16:
        # split into two grid steps so both v7x TensorCores get work
        return _round_up((m8 + 1) // 2, SUBLANE)
    return m8


# ----------------------------------------------------------------------------
# Pallas kernel: tap-accumulated matmul fused with folded BN + ReLU
# ----------------------------------------------------------------------------
def _conv_bn_relu_kernel(x_ref, w_ref, s_ref, b_ref, o_ref, *, n_taps):
    # x: (n_taps, TM, Kp) bf16, w: (n_taps, Kp, Np) bf16 (fully VMEM-resident),
    # s/b: (1, Np) f32, o: (TM, Np) f32.
    acc = jnp.dot(x_ref[0], w_ref[0], preferred_element_type=jnp.float32)
    for t in range(1, n_taps):  # unrolled; each tap is one MXU matmul
        acc = acc + jnp.dot(x_ref[t], w_ref[t],
                            preferred_element_type=jnp.float32)
    y = acc * s_ref[...] + b_ref[...]          # folded BN, f32 epilogue
    o_ref[...] = jnp.maximum(y, 0.0)           # ReLU


def conv_bn_relu(taps_bf16, w_bf16, scale_p, bias_p):
    """taps: (n_taps, M, Kp) bf16; w: (n_taps, Kp, Np) bf16; scale/bias: (Np,)
    f32 (already padded / lane-dense).  Returns (M, Np) f32."""
    n_taps, M, Kp = taps_bf16.shape
    Np = w_bf16.shape[-1]

    TM = _pick_tm(M)
    Mp = _round_up(M, TM)
    if Mp != M:  # only pad rows when needed (tiny SSD-head layers)
        taps_bf16 = jnp.pad(taps_bf16, ((0, 0), (0, Mp - M), (0, 0)))

    s2 = scale_p.reshape(1, Np)
    b2 = bias_p.reshape(1, Np)

    # Explicit VMEM budget (block footprint + margin), capped well below the
    # v7x 64 MiB physical limit.
    blk_bytes = (2 * n_taps * TM * Kp * 2     # taps, double-buffered, bf16
                 + 2 * n_taps * Kp * Np * 2   # resident weights, bf16
                 + 2 * TM * Np * 4            # output tiles, f32
                 + 4 * Np * 4)                # scale / bias
    vmem_bytes = int(min(max(blk_bytes + (2 << 20), 4 << 20), 48 << 20))

    out = pl.pallas_call(
        functools.partial(_conv_bn_relu_kernel, n_taps=n_taps),
        out_shape=jax.ShapeDtypeStruct((Mp, Np), jnp.float32),
        grid=(Mp // TM,),
        in_specs=[
            pl.BlockSpec((n_taps, TM, Kp), lambda i: (0, i, 0)),
            pl.BlockSpec((n_taps, Kp, Np), lambda i: (0, 0, 0)),  # resident
            pl.BlockSpec((1, Np), lambda i: (0, 0)),
            pl.BlockSpec((1, Np), lambda i: (0, 0)),
        ],
        out_specs=pl.BlockSpec((TM, Np), lambda i: (i, 0)),
        compiler_params=pltpu.CompilerParams(
            dimension_semantics=("parallel",),
            vmem_limit_bytes=vmem_bytes),
    )(taps_bf16, w_bf16, s2, b2)
    return out[:M] if Mp != M else out


# ----------------------------------------------------------------------------
# Tap extraction (plain-JAX glue; zero-padding matches PyTorch Conv2d)
# ----------------------------------------------------------------------------
def _extract_taps(x, k, stride, padding):
    """x: (N,H,W,C) -> taps (k*k, N*Ho*Wo, C), Ho, Wo.  Tap index = ky*k+kx."""
    N, H, W, C = x.shape
    if padding:
        x = jnp.pad(x, ((0, 0), (padding, padding), (padding, padding), (0, 0)))
    Ho = (H + 2 * padding - k) // stride + 1
    Wo = (W + 2 * padding - k) // stride + 1
    if k == 1 and stride == 1 and padding == 0:
        return x.reshape(1, N * H * W, C), Ho, Wo
    taps = []
    for ky in range(k):
        for kx in range(k):
            t = x[:, ky:ky + (Ho - 1) * stride + 1:stride,
                     kx:kx + (Wo - 1) * stride + 1:stride, :]
            taps.append(t.reshape(N * Ho * Wo, C))
    return jnp.stack(taps, axis=0), Ho, Wo


# ----------------------------------------------------------------------------
# BasicConv2d module
# ----------------------------------------------------------------------------
class BasicConv2d:
    """Conv2d(bias=False) -> BatchNorm2d(eps=1e-3, eval mode, folded) -> ReLU."""

    def __init__(self, key, in_channels, out_channels, kernel_size=1,
                 stride=1, padding=0, eps=1e-3):
        self.in_channels = in_channels
        self.out_channels = out_channels
        self.kernel_size = int(kernel_size)
        self.stride = int(stride)
        self.padding = int(padding)

        kw, kg, kb, km, kv = jax.random.split(key, 5)
        k = self.kernel_size
        fan_in = in_channels * k * k
        w = jax.random.normal(kw, (out_channels, in_channels, k, k),
                              jnp.float32) * (2.0 / fan_in) ** 0.5
        gamma = 1.0 + 0.1 * jax.random.normal(kg, (out_channels,), jnp.float32)
        beta = 0.05 * jax.random.normal(kb, (out_channels,), jnp.float32)
        mean = 0.05 * jax.random.normal(km, (out_channels,), jnp.float32)
        var = 0.9 + 0.2 * jax.random.uniform(kv, (out_channels,), jnp.float32)
        scale = gamma / jnp.sqrt(var + eps)   # folded (eval-mode) BatchNorm
        bias = beta - mean * scale

        self.w_f32 = w            # kept for the pure-JAX reference check
        self.scale = scale
        self.bias = bias

        # Build-time preparation: pad channels to lane multiples once, cast
        # weights to bf16 once, lay out as (k*k, Cin_p, Cout_p).
        self.cin_p = _round_up(in_channels, LANE)
        self.cout_p = _round_up(out_channels, LANE)
        wt = jnp.transpose(w, (2, 3, 1, 0)).reshape(k * k, in_channels,
                                                    out_channels)
        wt = jnp.pad(wt, ((0, 0),
                          (0, self.cin_p - in_channels),
                          (0, self.cout_p - out_channels)))
        self.w_bf16 = wt.astype(jnp.bfloat16)
        self.scale_p = jnp.pad(scale, (0, self.cout_p - out_channels))
        self.bias_p = jnp.pad(bias, (0, self.cout_p - out_channels))

    def __call__(self, x_nchw):
        x = jnp.transpose(x_nchw.astype(jnp.float32), (0, 2, 3, 1))  # NHWC
        N = x.shape[0]
        x = jnp.pad(x, ((0, 0), (0, 0), (0, 0),
                        (0, self.cin_p - self.in_channels)))
        taps, Ho, Wo = _extract_taps(x, self.kernel_size, self.stride,
                                     self.padding)
        taps = taps.astype(jnp.bfloat16)   # MXU-native; accumulation stays f32
        y = conv_bn_relu(taps, self.w_bf16, self.scale_p, self.bias_p)
        M = N * Ho * Wo
        y = y[:M, :self.out_channels].reshape(N, Ho, Wo, self.out_channels)
        return jnp.transpose(y, (0, 3, 1, 2))  # back to NCHW


# ----------------------------------------------------------------------------
# Pure-JAX reference (same bf16-rounded operands, f32 math)
# ----------------------------------------------------------------------------
def _reference(conv, x_nchw):
    xw = x_nchw.astype(jnp.bfloat16).astype(jnp.float32)
    ww = conv.w_f32.astype(jnp.bfloat16).astype(jnp.float32)
    y = jax.lax.conv_general_dilated(
        xw, ww, window_strides=(conv.stride, conv.stride),
        padding=[(conv.padding, conv.padding)] * 2,
        dimension_numbers=('NCHW', 'OIHW', 'NCHW'),
        precision=jax.lax.Precision.HIGHEST)
    s = conv.scale.reshape(1, -1, 1, 1)
    b = conv.bias.reshape(1, -1, 1, 1)
    return jnp.maximum(y * s + b, 0.0)


# ----------------------------------------------------------------------------
if __name__ == "__main__":
    root = jax.random.PRNGKey(0)
    kx, kc1, kc2 = jax.random.split(root, 3)
    x = jax.random.normal(kx, (2, 4, 16, 16), jnp.float32)   # NCHW like PyTorch

    # Same usage pattern as the SSD DownSample head: 1x1 reduce, 3x3 stride-2.
    conv_a = BasicConv2d(kc1, 4, 16, kernel_size=1)
    conv_b = BasicConv2d(kc2, 16, 32, kernel_size=3, stride=2, padding=1)

    @jax.jit
    def fwd(inp):
        y1 = conv_a(inp)
        y2 = conv_b(y1)
        return y1, y2

    y1, y2 = fwd(x)
    y1 = jax.block_until_ready(y1)
    y2 = jax.block_until_ready(y2)

    assert y1.shape == (2, 16, 16, 16), y1.shape
    assert y2.shape == (2, 32, 8, 8), y2.shape
    assert bool(jnp.isfinite(y1).all()) and bool(jnp.isfinite(y2).all())

    r1 = _reference(conv_a, x)
    r2 = _reference(conv_b, y1)
    assert jnp.allclose(y1, r1, rtol=1e-3, atol=1e-3), \
        float(jnp.max(jnp.abs(y1 - r1)))
    assert jnp.allclose(y2, r2, rtol=1e-3, atol=1e-3), \
        float(jnp.max(jnp.abs(y2 - r2)))

    print("KERNEL_OK")
</pallas_src>

<mosaic_0001>
module attributes {stable_mosaic.version = 11 : i64} {
  func.func @_conv_bn_relu_kernel(%arg0: i32, %arg1: memref<1x256x128xbf16, #tpu.memory_space<vmem>>, %arg2: memref<1x128x128xbf16, #tpu.memory_space<vmem>>, %arg3: memref<1x128xf32, #tpu.memory_space<vmem>>, %arg4: memref<1x128xf32, #tpu.memory_space<vmem>>, %arg5: memref<256x128xf32, #tpu.memory_space<vmem>>) attributes {dimension_semantics = [#tpu.dimension_semantics<parallel>], iteration_bounds = array<i64: 2>, scalar_prefetch = 0 : i64, scratch_operands = 0 : i64, tpu.core_type = #tpu.core_type<tc>, window_params = [{transform_indices = @transform_0, window_bounds = array<i64: 1, 256, 128>}, {pipeline_mode = #tpu.pipeline_mode<synchronous>, transform_indices = @transform_1, window_bounds = array<i64: 1, 128, 128>}, {pipeline_mode = #tpu.pipeline_mode<synchronous>, transform_indices = @transform_2, window_bounds = array<i64: 1, 128>}, {pipeline_mode = #tpu.pipeline_mode<synchronous>, transform_indices = @transform_3, window_bounds = array<i64: 1, 128>}, {transform_indices = @transform_4, window_bounds = array<i64: 256, 128>}]} {
    %c0 = arith.constant 0 : index
    %c0_0 = arith.constant 0 : index
    %c0_1 = arith.constant 0 : index
    %0 = vector.load %arg1[%c0, %c0_0, %c0_1] : memref<1x256x128xbf16, #tpu.memory_space<vmem>>, vector<1x256x128xbf16>
    %1 = vector.shape_cast %0 : vector<1x256x128xbf16> to vector<256x128xbf16>
    %c0_2 = arith.constant 0 : index
    %c0_3 = arith.constant 0 : index
    %c0_4 = arith.constant 0 : index
    %2 = vector.load %arg2[%c0_2, %c0_3, %c0_4] : memref<1x128x128xbf16, #tpu.memory_space<vmem>>, vector<1x128x128xbf16>
    %3 = vector.shape_cast %2 : vector<1x128x128xbf16> to vector<128x128xbf16>
    %cst = arith.constant dense<0.000000e+00> : vector<256x128xf32>
    %4 = tpu.matmul %1, %3, %cst {dimension_numbers = #tpu.dot_dimension_numbers<[1], [0], [0], [1], [0, 0, 1, 1], [], []>} : vector<256x128xbf16>, vector<128x128xbf16>, vector<256x128xf32> -> vector<256x128xf32>
    %c0_5 = arith.constant 0 : index
    %c0_6 = arith.constant 0 : index
    %5 = vector.load %arg3[%c0_5, %c0_6] : memref<1x128xf32, #tpu.memory_space<vmem>>, vector<1x128xf32>
    %6 = vector.broadcast %5 : vector<1x128xf32> to vector<256x128xf32>
    %7 = arith.mulf %4, %6 : vector<256x128xf32>
    %c0_7 = arith.constant 0 : index
    %c0_8 = arith.constant 0 : index
    %8 = vector.load %arg4[%c0_7, %c0_8] : memref<1x128xf32, #tpu.memory_space<vmem>>, vector<1x128xf32>
    %9 = vector.broadcast %8 : vector<1x128xf32> to vector<256x128xf32>
    %10 = arith.addf %7, %9 : vector<256x128xf32>
    %cst_9 = arith.constant 0.000000e+00 : f32
    %11 = vector.broadcast %cst_9 : f32 to vector<256x128xf32>
    %12 = arith.maximumf %10, %11 : vector<256x128xf32>
    %c0_10 = arith.constant 0 : index
    %c0_11 = arith.constant 0 : index
    %13 = vector.load %arg5[%c0_10, %c0_11] : memref<256x128xf32, #tpu.memory_space<vmem>>, vector<256x128xf32>
    tpu.vector_store %arg5[%c0_10, %c0_11], %12 {strides = array<i32>} : memref<256x128xf32, #tpu.memory_space<vmem>>, vector<256x128xf32>,
    return
  }
  func.func @transform_0(%arg0: i32) -> (i32, i32, i32) {
    %c0_i32 = arith.constant 0 : i32
    %c0_i32_0 = arith.constant 0 : i32
    %c0_i32_1 = arith.constant 0 : i32
    return %c0_i32, %arg0, %c0_i32_0 : i32, i32, i32
  }
  func.func @transform_1(%arg0: i32) -> (i32, i32, i32) {
    %c0_i32 = arith.constant 0 : i32
    %c0_i32_0 = arith.constant 0 : i32
    %c0_i32_1 = arith.constant 0 : i32
    %c0_i32_2 = arith.constant 0 : i32
    return %c0_i32, %c0_i32_0, %c0_i32_1 : i32, i32, i32
  }
  func.func @transform_2(%arg0: i32) -> (i32, i32) {
    %c0_i32 = arith.constant 0 : i32
    %c0_i32_0 = arith.constant 0 : i32
    %c0_i32_1 = arith.constant 0 : i32
    return %c0_i32, %c0_i32_0 : i32, i32
  }
  func.func @transform_3(%arg0: i32) -> (i32, i32) {
    %c0_i32 = arith.constant 0 : i32
    %c0_i32_0 = arith.constant 0 : i32
    %c0_i32_1 = arith.constant 0 : i32
    return %c0_i32, %c0_i32_0 : i32, i32
  }
  func.func @transform_4(%arg0: i32) -> (i32, i32) {
    %c0_i32 = arith.constant 0 : i32
    %c0_i32_0 = arith.constant 0 : i32
    return %arg0, %c0_i32 : i32, i32
  }
}

module attributes {stable_mosaic.version = 11 : i64} {
  func.func @_conv_bn_relu_kernel(%arg0: i32, %arg1: memref<9x64x128xbf16, #tpu.memory_space<vmem>>, %arg2: memref<9x128x128xbf16, #tpu.memory_space<vmem>>, %arg3: memref<1x128xf32, #tpu.memory_space<vmem>>, %arg4: memref<1x128xf32, #tpu.memory_space<vmem>>, %arg5: memref<64x128xf32, #tpu.memory_space<vmem>>) attributes {dimension_semantics = [#tpu.dimension_semantics<parallel>], iteration_bounds = array<i64: 2>, scalar_prefetch = 0 : i64, scratch_operands = 0 : i64, tpu.core_type = #tpu.core_type<tc>, window_params = [{transform_indices = @transform_0, window_bounds = array<i64: 9, 64, 128>}, {pipeline_mode = #tpu.pipeline_mode<synchronous>, transform_indices = @transform_1, window_bounds = array<i64: 9, 128, 128>}, {pipeline_mode = #tpu.pipeline_mode<synchronous>, transform_indices = @transform_2, window_bounds = array<i64: 1, 128>}, {pipeline_mode = #tpu.pipeline_mode<synchronous>, transform_indices = @transform_3, window_bounds = array<i64: 1, 128>}, {transform_indices = @transform_4, window_bounds = array<i64: 64, 128>}]} {
    %c0 = arith.constant 0 : index
    %c0_0 = arith.constant 0 : index
    %c0_1 = arith.constant 0 : index
    %0 = vector.load %arg1[%c0, %c0_0, %c0_1] : memref<9x64x128xbf16, #tpu.memory_space<vmem>>, vector<1x64x128xbf16>
    %1 = vector.shape_cast %0 : vector<1x64x128xbf16> to vector<64x128xbf16>
    %c0_2 = arith.constant 0 : index
    %c0_3 = arith.constant 0 : index
    %c0_4 = arith.constant 0 : index
    %2 = vector.load %arg2[%c0_2, %c0_3, %c0_4] : memref<9x128x128xbf16, #tpu.memory_space<vmem>>, vector<1x128x128xbf16>
    %3 = vector.shape_cast %2 : vector<1x128x128xbf16> to vector<128x128xbf16>
    %cst = arith.constant dense<0.000000e+00> : vector<64x128xf32>
    %4 = tpu.matmul %1, %3, %cst {dimension_numbers = #tpu.dot_dimension_numbers<[1], [0], [0], [1], [0, 0, 1, 1], [], []>} : vector<64x128xbf16>, vector<128x128xbf16>, vector<64x128xf32> -> vector<64x128xf32>
    %c1 = arith.constant 1 : index
    %c0_5 = arith.constant 0 : index
    %c0_6 = arith.constant 0 : index
    %5 = vector.load %arg1[%c1, %c0_5, %c0_6] : memref<9x64x128xbf16, #tpu.memory_space<vmem>>, vector<1x64x128xbf16>
    %6 = vector.shape_cast %5 : vector<1x64x128xbf16> to vector<64x128xbf16>
    %c1_7 = arith.constant 1 : index
    %c0_8 = arith.constant 0 : index
    %c0_9 = arith.constant 0 : index
    %7 = vector.load %arg2[%c1_7, %c0_8, %c0_9] : memref<9x128x128xbf16, #tpu.memory_space<vmem>>, vector<1x128x128xbf16>
    %8 = vector.shape_cast %7 : vector<1x128x128xbf16> to vector<128x128xbf16>
    %cst_10 = arith.constant dense<0.000000e+00> : vector<64x128xf32>
    %9 = tpu.matmul %6, %8, %cst_10 {dimension_numbers = #tpu.dot_dimension_numbers<[1], [0], [0], [1], [0, 0, 1, 1], [], []>} : vector<64x128xbf16>, vector<128x128xbf16>, vector<64x128xf32> -> vector<64x128xf32>
    %10 = arith.addf %4, %9 : vector<64x128xf32>
    %c2 = arith.constant 2 : index
    %c0_11 = arith.constant 0 : index
    %c0_12 = arith.constant 0 : index
    %11 = vector.load %arg1[%c2, %c0_11, %c0_12] : memref<9x64x128xbf16, #tpu.memory_space<vmem>>, vector<1x64x128xbf16>
    %12 = vector.shape_cast %11 : vector<1x64x128xbf16> to vector<64x128xbf16>
    %c2_13 = arith.constant 2 : index
    %c0_14 = arith.constant 0 : index
    %c0_15 = arith.constant 0 : index
    %13 = vector.load %arg2[%c2_13, %c0_14, %c0_15] : memref<9x128x128xbf16, #tpu.memory_space<vmem>>, vector<1x128x128xbf16>
    %14 = vector.shape_cast %13 : vector<1x128x128xbf16> to vector<128x128xbf16>
    %cst_16 = arith.constant dense<0.000000e+00> : vector<64x128xf32>
    %15 = tpu.matmul %12, %14, %cst_16 {dimension_numbers = #tpu.dot_dimension_numbers<[1], [0], [0], [1], [0, 0, 1, 1], [], []>} : vector<64x128xbf16>, vector<128x128xbf16>, vector<64x128xf32> -> vector<64x128xf32>
    %16 = arith.addf %10, %15 : vector<64x128xf32>
    %c3 = arith.constant 3 : index
    %c0_17 = arith.constant 0 : index
    %c0_18 = arith.constant 0 : index
    %17 = vector.load %arg1[%c3, %c0_17, %c0_18] : memref<9x64x128xbf16, #tpu.memory_space<vmem>>, vector<1x64x128xbf16>
    %18 = vector.shape_cast %17 : vector<1x64x128xbf16> to vector<64x128xbf16>
    %c3_19 = arith.constant 3 : index
    %c0_20 = arith.constant 0 : index
    %c0_21 = arith.constant 0 : index
    %19 = vector.load %arg2[%c3_19, %c0_20, %c0_21] : memref<9x128x128xbf16, #tpu.memory_space<vmem>>, vector<1x128x128xbf16>
    %20 = vector.shape_cast %19 : vector<1x128x128xbf16> to vector<128x128xbf16>
    %cst_22 = arith.constant dense<0.000000e+00> : vector<64x128xf32>
    %21 = tpu.matmul %18, %20, %cst_22 {dimension_numbers = #tpu.dot_dimension_numbers<[1], [0], [0], [1], [0, 0, 1, 1], [], []>} : vector<64x128xbf16>, vector<128x128xbf16>, vector<64x128xf32> -> vector<64x128xf32>
    %22 = arith.addf %16, %21 : vector<64x128xf32>
    %c4 = arith.constant 4 : index
    %c0_23 = arith.constant 0 : index
    %c0_24 = arith.constant 0 : index
    %23 = vector.load %arg1[%c4, %c0_23, %c0_24] : memref<9x64x128xbf16, #tpu.memory_space<vmem>>, vector<1x64x128xbf16>
    %24 = vector.shape_cast %23 : vector<1x64x128xbf16> to vector<64x128xbf16>
    %c4_25 = arith.constant 4 : index
    %c0_26 = arith.constant 0 : index
    %c0_27 = arith.constant 0 : index
    %25 = vector.load %arg2[%c4_25, %c0_26, %c0_27] : memref<9x128x128xbf16, #tpu.memory_space<vmem>>, vector<1x128x128xbf16>
    %26 = vector.shape_cast %25 : vector<1x128x128xbf16> to vector<128x128xbf16>
    %cst_28 = arith.constant dense<0.000000e+00> : vector<64x128xf32>
    %27 = tpu.matmul %24, %26, %cst_28 {dimension_numbers = #tpu.dot_dimension_numbers<[1], [0], [0], [1], [0, 0, 1, 1], [], []>} : vector<64x128xbf16>, vector<128x128xbf16>, vector<64x128xf32> -> vector<64x128xf32>
    %28 = arith.addf %22, %27 : vector<64x128xf32>
    %c5 = arith.constant 5 : index
    %c0_29 = arith.constant 0 : index
    %c0_30 = arith.constant 0 : index
    %29 = vector.load %arg1[%c5, %c0_29, %c0_30] : memref<9x64x128xbf16, #tpu.memory_space<vmem>>, vector<1x64x128xbf16>
    %30 = vector.shape_cast %29 : vector<1x64x128xbf16> to vector<64x128xbf16>
    %c5_31 = arith.constant 5 : index
    %c0_32 = arith.constant 0 : index
    %c0_33 = arith.constant 0 : index
    %31 = vector.load %arg2[%c5_31, %c0_32, %c0_33] : memref<9x128x128xbf16, #tpu.memory_space<vmem>>, vector<1x128x128xbf16>
    %32 = vector.shape_cast %31 : vector<1x128x128xbf16> to vector<128x128xbf16>
    %cst_34 = arith.constant dense<0.000000e+00> : vector<64x128xf32>
    %33 = tpu.matmul %30, %32, %cst_34 {dimension_numbers = #tpu.dot_dimension_numbers<[1], [0], [0], [1], [0, 0, 1, 1], [], []>} : vector<64x128xbf16>, vector<128x128xbf16>, vector<64x128xf32> -> vector<64x128xf32>
    %34 = arith.addf %28, %33 : vector<64x128xf32>
    %c6 = arith.constant 6 : index
    %c0_35 = arith.constant 0 : index
    %c0_36 = arith.constant 0 : index
    %35 = vector.load %arg1[%c6, %c0_35, %c0_36] : memref<9x64x128xbf16, #tpu.memory_space<vmem>>, vector<1x64x128xbf16>
    %36 = vector.shape_cast %35 : vector<1x64x128xbf16> to vector<64x128xbf16>
    %c6_37 = arith.constant 6 : index
    %c0_38 = arith.constant 0 : index
    %c0_39 = arith.constant 0 : index
    %37 = vector.load %arg2[%c6_37, %c0_38, %c0_39] : memref<9x128x128xbf16, #tpu.memory_space<vmem>>, vector<1x128x128xbf16>
    %38 = vector.shape_cast %37 : vector<1x128x128xbf16> to vector<128x128xbf16>
    %cst_40 = arith.constant dense<0.000000e+00> : vector<64x128xf32>
    %39 = tpu.matmul %36, %38, %cst_40 {dimension_numbers = #tpu.dot_dimension_numbers<[1], [0], [0], [1], [0, 0, 1, 1], [], []>} : vector<64x128xbf16>, vector<128x128xbf16>, vector<64x128xf32> -> vector<64x128xf32>
    %40 = arith.addf %34, %39 : vector<64x128xf32>
    %c7 = arith.constant 7 : index
    %c0_41 = arith.constant 0 : index
    %c0_42 = arith.constant 0 : index
    %41 = vector.load %arg1[%c7, %c0_41, %c0_42] : memref<9x64x128xbf16, #tpu.memory_space<vmem>>, vector<1x64x128xbf16>
    %42 = vector.shape_cast %41 : vector<1x64x128xbf16> to vector<64x128xbf16>
    %c7_43 = arith.constant 7 : index
    %c0_44 = arith.constant 0 : index
    %c0_45 = arith.constant 0 : index
    %43 = vector.load %arg2[%c7_43, %c0_44, %c0_45] : memref<9x128x128xbf16, #tpu.memory_space<vmem>>, vector<1x128x128xbf16>
    %44 = vector.shape_cast %43 : vector<1x128x128xbf16> to vector<128x128xbf16>
    %cst_46 = arith.constant dense<0.000000e+00> : vector<64x128xf32>
    %45 = tpu.matmul %42, %44, %cst_46 {dimension_numbers = #tpu.dot_dimension_numbers<[1], [0], [0], [1], [0, 0, 1, 1], [], []>} : vector<64x128xbf16>, vector<128x128xbf16>, vector<64x128xf32> -> vector<64x128xf32>
    %46 = arith.addf %40, %45 : vector<64x128xf32>
    %c8 = arith.constant 8 : index
    %c0_47 = arith.constant 0 : index
    %c0_48 = arith.constant 0 : index
    %47 = vector.load %arg1[%c8, %c0_47, %c0_48] : memref<9x64x128xbf16, #tpu.memory_space<vmem>>, vector<1x64x128xbf16>
    %48 = vector.shape_cast %47 : vector<1x64x128xbf16> to vector<64x128xbf16>
    %c8_49 = arith.constant 8 : index
    %c0_50 = arith.constant 0 : index
    %c0_51 = arith.constant 0 : index
    %49 = vector.load %arg2[%c8_49, %c0_50, %c0_51] : memref<9x128x128xbf16, #tpu.memory_space<vmem>>, vector<1x128x128xbf16>
    %50 = vector.shape_cast %49 : vector<1x128x128xbf16> to vector<128x128xbf16>
    %cst_52 = arith.constant dense<0.000000e+00> : vector<64x128xf32>
    %51 = tpu.matmul %48, %50, %cst_52 {dimension_numbers = #tpu.dot_dimension_numbers<[1], [0], [0], [1], [0, 0, 1, 1], [], []>} : vector<64x128xbf16>, vector<128x128xbf16>, vector<64x128xf32> -> vector<64x128xf32>
    %52 = arith.addf %46, %51 : vector<64x128xf32>
    %c0_53 = arith.constant 0 : index
    %c0_54 = arith.constant 0 : index
    %53 = vector.load %arg3[%c0_53, %c0_54] : memref<1x128xf32, #tpu.memory_space<vmem>>, vector<1x128xf32>
    %54 = vector.broadcast %53 : vector<1x128xf32> to vector<64x128xf32>
    %55 = arith.mulf %52, %54 : vector<64x128xf32>
    %c0_55 = arith.constant 0 : index
    %c0_56 = arith.constant 0 : index
    %56 = vector.load %arg4[%c0_55, %c0_56] : memref<1x128xf32, #tpu.memory_space<vmem>>, vector<1x128xf32>
    %57 = vector.broadcast %56 : vector<1x128xf32> to vector<64x128xf32>
    %58 = arith.addf %55, %57 : vector<64x128xf32>
    %cst_57 = arith.constant 0.000000e+00 : f32
    %59 = vector.broadcast %cst_57 : f32 to vector<64x128xf32>
    %60 = arith.maximumf %58, %59 : vector<64x128xf32>
    %c0_58 = arith.constant 0 : index
    %c0_59 = arith.constant 0 : index
    %61 = vector.load %arg5[%c0_58, %c0_59] : memref<64x128xf32, #tpu.memory_space<vmem>>, vector<64x128xf32>
    tpu.vector_store %arg5[%c0_58, %c0_59], %60 {strides = array<i32>} : memref<64x128xf32, #tpu.memory_space<vmem>>, vector<64x128xf32>,
    return
  }
  func.func @transform_0(%arg0: i32) -> (i32, i32, i32) {
    %c0_i32 = arith.constant 0 : i32
    %c0_i32_0 = arith.constant 0 : i32
    %c0_i32_1 = arith.constant 0 : i32
    return %c0_i32, %arg0, %c0_i32_0 : i32, i32, i32
  }
  func.func @transform_1(%arg0: i32) -> (i32, i32, i32) {
    %c0_i32 = arith.constant 0 : i32
    %c0_i32_0 = arith.constant 0 : i32
    %c0_i32_1 = arith.constant 0 : i32
    %c0_i32_2 = arith.constant 0 : i32
    return %c0_i32, %c0_i32_0, %c0_i32_1 : i32, i32, i32
  }
  func.func @transform_2(%arg0: i32) -> (i32, i32) {
    %c0_i32 = arith.constant 0 : i32
    %c0_i32_0 = arith.constant 0 : i32
    %c0_i32_1 = arith.constant 0 : i32
    return %c0_i32, %c0_i32_0 : i32, i32
  }
  func.func @transform_3(%arg0: i32) -> (i32, i32) {
    %c0_i32 = arith.constant 0 : i32
    %c0_i32_0 = arith.constant 0 : i32
    %c0_i32_1 = arith.constant 0 : i32
    return %c0_i32, %c0_i32_0 : i32, i32
  }
  func.func @transform_4(%arg0: i32) -> (i32, i32) {
    %c0_i32 = arith.constant 0 : i32
    %c0_i32_0 = arith.constant 0 : i32
    return %arg0, %c0_i32 : i32, i32
  }
}

</mosaic_0001>

<llo_original>
// kernel: fwd.2
$region0: #{fwd.2}
  #allocation0 [shape = 'u32[]', space=smem, size = 0x4, offset = 0x4, fixed_abs, tag = 'smem constant byte address 0x4 - core index']
  #allocation1 [shape = 'u32[144,128]{1,0:T(1,128)}', space=vmem, size = 0x12000, scoped, tag = 'internal scratch']
  %s0 = inlined_call_operand.vmem [shape: bf16[1,512,128], index: 0, kind: input, shape index: {}]
  %s1 = inlined_call_operand.vmem [shape: bf16[1,128,128], index: 1, kind: input, shape index: {}]
  %s2 = inlined_call_operand.vmem [shape: f32[1,128], index: 2, kind: input, shape index: {}]
  %s3 = inlined_call_operand.vmem [shape: f32[1,128], index: 3, kind: input, shape index: {}]
  %s4 = inlined_call_operand.vmem [shape: f32[512,128], index: 4, kind: output, shape index: {}]
  %s5 = sld [smem:[#allocation0]]
  $region49: #{fwd.2} parent=0
    _
  %s7 = ssub.s32 1, %s5
  %s8 = scalar_select 0, %s7, %s5
  loop: start=0, step=1, limit=4
  $region2: #{fwd.2} parent=0 // loop_pre_header
    _
  $region3: #{fwd.2} parent=0 // loop_header
    %s10 = sphi 0, %s14
    %p11 = scmp.ge.s32.totalorder %s10, 4
    %s20 = sphi 0, %s22
    %s23 = sphi 0, %s20
    %s24 = sphi 0, %s23
    %s40 = sphi 0, %s24
    %s44 = sphi 0, %s44
    %s46 = sphi 0, %s44
    %s47 = sphi 0, %s46
    %s61 = sphi 0, %s47
    %s65 = sphi 0, %s65
    %s67 = sphi 0, %s65
    %s68 = sphi 0, %s67
    %s82 = sphi 0, %s68
    %s86 = sphi 0, %s86
    %s88 = sphi 0, %s86
    %s89 = sphi 0, %s88
    %s103 = sphi 0, %s89
    %s109 = sphi 0, %s111
    %s112 = sphi 0, %s109
    %s113 = sphi 0, %s112
    %s129 = sphi 0, %s113
  $region4: #{fwd.2} parent=0 // loop_header_branch
    %13 = sbr.rel (%p11) target = $region8
  $region5: #{fwd.2} parent=0 // loop_body
    %s15 = ssub.s32 %s10, 1
    %s16 = ssub.s32 %s10, 2
    %s17 = sadd.s32 %s10, 1
    %s18 = ssub.s32 %s10, %s17
    %p19 = scmp.eq.s32.totalorder %s18, 0
    %s21 = sadd.s32 %s20, 1
    %s22 = scalar_select %p19, %s20, %s21
    %p25 = pneg %p19
    %p26 = scmp.eq.s32.totalorder %s10, 1
    %p27 = por %p25, %p26
    %p28 = scmp.ne.s32.totalorder %s20, %s23
    %p29 = scmp.eq.s32.totalorder %s10, 0
    %p30 = por %p28, %p29
    %p31 = scmp.ne.s32.totalorder %s20, %s23
    %p32 = scmp.eq.s32.totalorder %s15, 1
    %p33 = por %p31, %p32
    %p34 = scmp.ne.s32.totalorder %s23, %s24
    %p35 = scmp.eq.s32.totalorder %s15, 0
    %p36 = por %p34, %p35
    %p37 = scmp.ne.s32.totalorder %s23, %s24
    %p38 = scmp.eq.s32.totalorder %s16, 1
    %p39 = por %p37, %p38
    %p41 = scmp.ne.s32.totalorder %s24, %s40
    %p42 = scmp.eq.s32.totalorder %s16, 0
    %p43 = por %p41, %p42
    %s45 = sadd.s32 %s44, 1
    %p48 = scmp.eq.s32.totalorder %s10, 1
    %p49 = scmp.ne.s32.totalorder %s44, %s46
    %p50 = scmp.eq.s32.totalorder %s10, 0
    %p51 = por %p49, %p50
    %p52 = scmp.ne.s32.totalorder %s44, %s46
    %p53 = scmp.eq.s32.totalorder %s15, 1
    %p54 = por %p52, %p53
    %p55 = scmp.ne.s32.totalorder %s46, %s47
    %p56 = scmp.eq.s32.totalorder %s15, 0
    %p57 = por %p55, %p56
    %p58 = scmp.ne.s32.totalorder %s46, %s47
    %p59 = scmp.eq.s32.totalorder %s16, 1
    %p60 = por %p58, %p59
    %p62 = scmp.ne.s32.totalorder %s47, %s61
    %p63 = scmp.eq.s32.totalorder %s16, 0
    %p64 = por %p62, %p63
    %s66 = sadd.s32 %s65, 1
    %p69 = scmp.eq.s32.totalorder %s10, 1
    %p70 = scmp.ne.s32.totalorder %s65, %s67
    %p71 = scmp.eq.s32.totalorder %s10, 0
    %p72 = por %p70, %p71
    %p73 = scmp.ne.s32.totalorder %s65, %s67
    %p74 = scmp.eq.s32.totalorder %s15, 1
    %p75 = por %p73, %p74
    %p76 = scmp.ne.s32.totalorder %s67, %s68
    %p77 = scmp.eq.s32.totalorder %s15, 0
    %p78 = por %p76, %p77
    %p79 = scmp.ne.s32.totalorder %s67, %s68
    %p80 = scmp.eq.s32.totalorder %s16, 1
    %p81 = por %p79, %p80
    %p83 = scmp.ne.s32.totalorder %s68, %s82
    %p84 = scmp.eq.s32.totalorder %s16, 0
    %p85 = por %p83, %p84
    %s87 = sadd.s32 %s86, 1
    %p90 = scmp.eq.s32.totalorder %s10, 1
    %p91 = scmp.ne.s32.totalorder %s86, %s88
    %p92 = scmp.eq.s32.totalorder %s10, 0
    %p93 = por %p91, %p92
    %p94 = scmp.ne.s32.totalorder %s86, %s88
    %p95 = scmp.eq.s32.totalorder %s15, 1
    %p96 = por %p94, %p95
    %p97 = scmp.ne.s32.totalorder %s88, %s89
    %p98 = scmp.eq.s32.totalorder %s15, 0
    %p99 = por %p97, %p98
    %p100 = scmp.ne.s32.totalorder %s88, %s89
    %p101 = scmp.eq.s32.totalorder %s16, 1
    %p102 = por %p100, %p101
    %p104 = scmp.ne.s32.totalorder %s89, %s103
    %p105 = scmp.eq.s32.totalorder %s16, 0
    %p106 = por %p104, %p105
    %s107 = ssub.s32 %s10, %s17
    %p108 = scmp.eq.s32.totalorder %s107, 0
    %s110 = sadd.s32 %s109, 1
    %s111 = scalar_select %p108, %s109, %s110
    %p114 = pneg %p108
    %p115 = scmp.eq.s32.totalorder %s10, 1
    %p116 = por %p114, %p115
    %p117 = scmp.ne.s32.totalorder %s109, %s112
    %p118 = scmp.eq.s32.totalorder %s10, 0
    %p119 = por %p117, %p118
    %p120 = scmp.ne.s32.totalorder %s109, %s112
    %p121 = scmp.eq.s32.totalorder %s15, 1
    %p122 = por %p120, %p121
    %p123 = scmp.ne.s32.totalorder %s112, %s113
    %p124 = scmp.eq.s32.totalorder %s15, 0
    %p125 = por %p123, %p124
    %p126 = scmp.ne.s32.totalorder %s112, %s113
    %p127 = scmp.eq.s32.totalorder %s16, 1
    %p128 = por %p126, %p127
    %p130 = scmp.ne.s32.totalorder %s113, %s129
    %p131 = scmp.eq.s32.totalorder %s16, 0
    %p132 = por %p130, %p131
    %p133 = scmp.le.s32.totalorder 1, %s10
    %p134 = scmp.lt.s32.totalorder %s10, 3
    %p135 = pnand %p133, %p134
    %p136 = pneg %p135
    // Predicated region
    $region9: #{fwd.2} parent=5 // pred_check
      _
    $region10: #{fwd.2} parent=5 // pred_check_branch
      %138 = sbr.rel (%p135) target = $region12
    $region11: #{fwd.2} parent=5 // pred_region
      %s139 = ssub.s32 %s10, 1
      // Predicated region
      $region13: #{fwd.2} parent=11 // pred_check
        %p140 = pneg %p57
      $region14: #{fwd.2} parent=11 // pred_check_branch
        %142 = sbr.rel (%p140) target = $region16
      $region15: #{fwd.2} parent=11 // pred_region
        _
      $region16: #{fwd.2} parent=11 // pred_fallthru
        _
      // Predicated region
      $region17: #{fwd.2} parent=11 // pred_check
        %p143 = pneg %p78
      $region18: #{fwd.2} parent=11 // pred_check_branch
        %145 = sbr.rel (%p143) target = $region20
      $region19: #{fwd.2} parent=11 // pred_region
        _
      $region20: #{fwd.2} parent=11 // pred_fallthru
        _
      // Predicated region
      $region21: #{fwd.2} parent=11 // pred_check
        %p146 = pneg %p99
      $region22: #{fwd.2} parent=11 // pred_check_branch
        %148 = sbr.rel (%p146) target = $region24
      $region23: #{fwd.2} parent=11 // pred_region
        _
      $region24: #{fwd.2} parent=11 // pred_fallthru
        _
    $region12: #{fwd.2} parent=5 // pred_fallthru
      _
    %p149 = scmp.lt.s32.totalorder %s10, 2
    // Predicated region
    $region25: #{fwd.2} parent=5 // pred_check
      %p150 = pneg %p149
    $region26: #{fwd.2} parent=5 // pred_check_branch
      %152 = sbr.rel (%p150) target = $region28
    $region27: #{fwd.2} parent=5 // pred_region
      // Predicated region
      $region29: #{fwd.2} parent=27 // pred_check
        %p153 = pneg %p30
      $region30: #{fwd.2} parent=27 // pred_check_branch
        %155 = sbr.rel (%p153) target = $region32
      $region31: #{fwd.2} parent=27 // pred_region
        %s156 = smul.u32 32, %s10
        %p157 = scmp.lt.s32.totalorder %s156, 63
        %s158 = scalar_select %p157, %s156, 63
        %s159 = smul.addr %s158, 4
        %s160 = scalar_lea.vmem %s0, %s159
        %s161 = smul.u32 32, %s10
      $region32: #{fwd.2} parent=27 // pred_fallthru
        _
    $region28: #{fwd.2} parent=5 // pred_fallthru
      _
    %p162 = scmp.le.s32.totalorder 1, %s10
    %p163 = scmp.lt.s32.totalorder %s10, 3
    %p164 = pnand %p162, %p163
    %p165 = pneg %p164
    // Predicated region
    $region33: #{fwd.2} parent=5 // pred_check
      _
    $region34: #{fwd.2} parent=5 // pred_check_branch
      %167 = sbr.rel (%p164) target = $region36
    $region35: #{fwd.2} parent=5 // pred_region
      %s168 = ssub.s32 %s10, 1
      %s169 = smul.u32 32, %s15
      %p170 = scmp.lt.s32.totalorder %s169, 63
      %s171 = scalar_select %p170, %s169, 63
      %s172 = smul.addr %s171, 4
      %s173 = scalar_lea.vmem %s0, %s172
      %p174 = pneg %p36
      %p175 = pneg %p33
      %p176 = pneg %p57
      %p177 = pneg %p54
      %p178 = pneg %p78
      %p179 = pneg %p75
      %p180 = pneg %p99
      %p181 = pneg %p96
      %p182 = pneg %p125
      %p183 = pneg %p122
      %s184 = smul.u32 32, %s15
      %p185 = scmp.lt.s32.totalorder %s184, 63
      %s186 = scalar_select %p185, %s184, 63
      %s187 = smul.addr %s186, 8
      %s188 = scalar_lea.vmem %s4, %s187
      %s189 = smul.u32 32, %s15
      %p190 = scmp.lt.s32.totalorder %s189, 63
      %s191 = scalar_select %p190, %s189, 63
      %s192 = smul.addr %s191, 4
      %s193 = scalar_lea.vmem %s0, %s192
      %s194 = smul.u32 32, %s15
      %s195 = smul.u32 32, %s15
      %p196 = scmp.lt.s32.totalorder %s195, 63
      %s197 = scalar_select %p196, %s195, 63
      %s198 = smul.addr %s197, 8
      %s199 = scalar_lea.vmem %s4, %s198
      %s200 = smul.u32 32, %s15
      %v202 = vld [vmem:[%s193] sm:$0xf]
      %v203 = vld [vmem:[%s193 + $0x4] sm:$0xf]
      %v204 = vld [vmem:[%s193 + $0x8] sm:$0xf]
      %v205 = vld [vmem:[%s193 + $0xc] sm:$0xf]
      %v206 = vld [vmem:[%s193 + $0x10] sm:$0xf]
      %v207 = vld [vmem:[%s193 + $0x14] sm:$0xf]
      %v208 = vld [vmem:[%s193 + $0x18] sm:$0xf]
      %v209 = vld [vmem:[%s193 + $0x1c] sm:$0xf]
      %v210 = vld [vmem:[%s193 + $0x20] sm:$0xf]
      %v211 = vld [vmem:[%s193 + $0x24] sm:$0xf]
      %v212 = vld [vmem:[%s193 + $0x28] sm:$0xf]
      %v213 = vld [vmem:[%s193 + $0x2c] sm:$0xf]
      %v214 = vld [vmem:[%s193 + $0x30] sm:$0xf]
      %v215 = vld [vmem:[%s193 + $0x34] sm:$0xf]
      %v216 = vld [vmem:[%s193 + $0x38] sm:$0xf]
      %v217 = vld [vmem:[%s193 + $0x3c] sm:$0xf]
      %v218 = vld [vmem:[%s193 + $0x40] sm:$0xf]
      %v219 = vld [vmem:[%s193 + $0x44] sm:$0xf]
      %v220 = vld [vmem:[%s193 + $0x48] sm:$0xf]
      %v221 = vld [vmem:[%s193 + $0x4c] sm:$0xf]
      %v222 = vld [vmem:[%s193 + $0x50] sm:$0xf]
      %v223 = vld [vmem:[%s193 + $0x54] sm:$0xf]
      %v224 = vld [vmem:[%s193 + $0x58] sm:$0xf]
      %v225 = vld [vmem:[%s193 + $0x5c] sm:$0xf]
      %v226 = vld [vmem:[%s193 + $0x60] sm:$0xf]
      %v227 = vld [vmem:[%s193 + $0x64] sm:$0xf]
      %v228 = vld [vmem:[%s193 + $0x68] sm:$0xf]
      %v229 = vld [vmem:[%s193 + $0x6c] sm:$0xf]
      %v230 = vld [vmem:[%s193 + $0x70] sm:$0xf]
      %v231 = vld [vmem:[%s193 + $0x74] sm:$0xf]
      %v232 = vld [vmem:[%s193 + $0x78] sm:$0xf]
      %v233 = vld [vmem:[%s193 + $0x7c] sm:$0xf]
      %v234 = vld [vmem:[%s1] sm:$0xf]
      %v235 = vld [vmem:[%s1 + $0x4] sm:$0xf]
      %v236 = vld [vmem:[%s1 + $0x8] sm:$0xf]
      %v237 = vld [vmem:[%s1 + $0xc] sm:$0xf]
      %v238 = vld [vmem:[%s1 + $0x10] sm:$0xf]
      %v239 = vld [vmem:[%s1 + $0x14] sm:$0xf]
      %v240 = vld [vmem:[%s1 + $0x18] sm:$0xf]
      %v241 = vld [vmem:[%s1 + $0x1c] sm:$0xf]
      %v242 = vld [vmem:[%s1 + $0x20] sm:$0xf]
      %v243 = vld [vmem:[%s1 + $0x24] sm:$0xf]
      %v244 = vld [vmem:[%s1 + $0x28] sm:$0xf]
      %v245 = vld [vmem:[%s1 + $0x2c] sm:$0xf]
      %v246 = vld [vmem:[%s1 + $0x30] sm:$0xf]
      %v247 = vld [vmem:[%s1 + $0x34] sm:$0xf]
      %v248 = vld [vmem:[%s1 + $0x38] sm:$0xf]
      %v249 = vld [vmem:[%s1 + $0x3c] sm:$0xf]
      %v282 = vunpack.c.l.b16 %v202
      %v283 = vunpack.c.l.b16 %v203
      %v284 = vunpack.c.l.b16 %v204
      %v285 = vunpack.c.l.b16 %v205
      %v286 = vunpack.c.l.b16 %v206
      %v287 = vunpack.c.l.b16 %v207
      %v288 = vunpack.c.l.b16 %v208
      %v289 = vunpack.c.l.b16 %v209
      %v290 = vunpack.c.l.b16 %v210
      %v291 = vunpack.c.l.b16 %v211
      %v292 = vunpack.c.l.b16 %v212
      %v293 = vunpack.c.l.b16 %v213
      %v294 = vunpack.c.l.b16 %v214
      %v295 = vunpack.c.l.b16 %v215
      %v296 = vunpack.c.l.b16 %v216
      %v297 = vunpack.c.l.b16 %v217
      %v298 = vunpack.c.l.b16 %v218
      %v299 = vunpack.c.l.b16 %v219
      %v300 = vunpack.c.l.b16 %v220
      %v301 = vunpack.c.l.b16 %v221
      %v302 = vunpack.c.l.b16 %v222
      %v303 = vunpack.c.l.b16 %v223
      %v304 = vunpack.c.l.b16 %v224
      %v305 = vunpack.c.l.b16 %v225
      %v306 = vunpack.c.l.b16 %v226
      %v307 = vunpack.c.l.b16 %v227
      %v308 = vunpack.c.l.b16 %v228
      %v309 = vunpack.c.l.b16 %v229
      %v310 = vunpack.c.l.b16 %v230
      %v311 = vunpack.c.l.b16 %v231
      %v312 = vunpack.c.l.b16 %v232
      %v313 = vunpack.c.l.b16 %v233
      %v314 = vpack.c.b16 %v283, %v282
      %v315 = vpack.c.b16 %v285, %v284
      %v316 = vpack.c.b16 %v287, %v286
      %v317 = vpack.c.b16 %v289, %v288
      %v318 = vpack.c.b16 %v291, %v290
      %v319 = vpack.c.b16 %v293, %v292
      %v320 = vpack.c.b16 %v295, %v294
      %v321 = vpack.c.b16 %v297, %v296
      %v322 = vpack.c.b16 %v299, %v298
      %v323 = vpack.c.b16 %v301, %v300
      %v324 = vpack.c.b16 %v303, %v302
      %v325 = vpack.c.b16 %v305, %v304
      %v326 = vpack.c.b16 %v307, %v306
      %v327 = vpack.c.b16 %v309, %v308
      %v328 = vpack.c.b16 %v311, %v310
      %v329 = vpack.c.b16 %v313, %v312
      %v362 = vunpack.c.l.b16 %v234
      %v363 = vunpack.c.l.b16 %v235
      %v364 = vunpack.c.l.b16 %v236
      %v365 = vunpack.c.l.b16 %v237
      %v366 = vunpack.c.l.b16 %v238
      %v367 = vunpack.c.l.b16 %v239
      %v368 = vunpack.c.l.b16 %v240
      %v369 = vunpack.c.l.b16 %v241
      %v370 = vunpack.c.l.b16 %v242
      %v371 = vunpack.c.l.b16 %v243
      %v372 = vunpack.c.l.b16 %v244
      %v373 = vunpack.c.l.b16 %v245
      %v374 = vunpack.c.l.b16 %v246
      %v375 = vunpack.c.l.b16 %v247
      %v376 = vunpack.c.l.b16 %v248
      %v377 = vunpack.c.l.b16 %v249
      %v378 = vpack.c.b16 %v363, %v362
      %v379 = vpack.c.b16 %v365, %v364
      %v380 = vpack.c.b16 %v367, %v366
      %v381 = vpack.c.b16 %v369, %v368
      %v382 = vpack.c.b16 %v371, %v370
      %v383 = vpack.c.b16 %v373, %v372
      %v384 = vpack.c.b16 %v375, %v374
      %v385 = vpack.c.b16 %v377, %v376
      %394 = vmatprep.subr.bf16.mxu0 0
      %395 = vmatpush1.bf16.msra.mxu0 %v378
      %396 = vmatprep.subr.bf16.mxu0 0
      %397 = vmatpush1.bf16.msra.mxu0 %v379
      %398 = vmatprep.subr.bf16.mxu0 0
      %399 = vmatpush1.bf16.msra.mxu0 %v380
      %400 = vmatprep.subr.bf16.mxu0 0
      %401 = vmatpush1.bf16.msra.mxu0 %v381
      %402 = vmatprep.subr.bf16.mxu0 0
      %403 = vmatpush1.bf16.msra.mxu0 %v382
      %404 = vmatprep.subr.bf16.mxu0 0
      %405 = vmatpush1.bf16.msra.mxu0 %v383
      %406 = vmatprep.subr.bf16.mxu0 0
      %407 = vmatpush1.bf16.msra.mxu0 %v384
      %408 = vmatprep.subr.bf16.mxu0 0
      %409 = vmatpush1.bf16.msra.mxu0 %v385
      %410 = vmatprep.subr.bf16.mxu0 0
      %411 = vmatpush1.bf16.msra.mxu0 0
      %412 = vmatprep.subr.bf16.mxu0 0
      %413 = vmatpush1.bf16.msra.mxu0 0
      %414 = vmatprep.subr.bf16.mxu0 0
      %415 = vmatpush1.bf16.msra.mxu0 0
      %416 = vmatprep.subr.bf16.mxu0 0
      %417 = vmatpush1.bf16.msra.mxu0 0
      %418 = vmatprep.subr.bf16.mxu0 0
      %419 = vmatpush1.bf16.msra.mxu0 0
      %420 = vmatprep.subr.bf16.mxu0 0
      %421 = vmatpush1.bf16.msra.mxu0 0
      %422 = vmatprep.subr.bf16.mxu0 0
      %423 = vmatpush1.bf16.msra.mxu0 0
      %424 = vmatprep.subr.bf16.mxu0 0
      %425 = vmatpush1.bf16.msra.mxu0 0
      %426 = vmatprep.mubr.bf16.mxu0 0
      %427 = vmatmul.mubr.bf16.gmra.mrb[0].mxu0 %v314
      %v428 = vpop.f32.mrb[0].mxu0
      %v429 = vadd.f32 0.0, %v428
      %v430 = vpop.f32.mrb[0].mxu0
      %v431 = vpop.f32.mrb[0].mxu0
      %v432 = vadd.f32 0.0, %v431
      %v433 = vpop.f32.mrb[0].mxu0
      %434 = vmatprep.mubr.bf16.mxu0 0
      %435 = vmatmul.mubr.bf16.gmra.mrb[0].mxu0 %v315
      %v436 = vpop.f32.mrb[0].mxu0
      %v437 = vadd.f32 0.0, %v436
      %v438 = vpop.f32.mrb[0].mxu0
      %v439 = vpop.f32.mrb[0].mxu0
      %v440 = vadd.f32 0.0, %v439
      %v441 = vpop.f32.mrb[0].mxu0
      %442 = vmatprep.mubr.bf16.mxu0 0
      %443 = vmatmul.mubr.bf16.gmra.mrb[0].mxu0 %v316
      %v444 = vpop.f32.mrb[0].mxu0
      %v445 = vadd.f32 0.0, %v444
      %v446 = vpop.f32.mrb[0].mxu0
      %v447 = vpop.f32.mrb[0].mxu0
      %v448 = vadd.f32 0.0, %v447
      %v449 = vpop.f32.mrb[0].mxu0
      %450 = vmatprep.mubr.bf16.mxu0 0
      %451 = vmatmul.mubr.bf16.gmra.mrb[0].mxu0 %v317
      %v452 = vpop.f32.mrb[0].mxu0
      %v453 = vadd.f32 0.0, %v452
      %v454 = vpop.f32.mrb[0].mxu0
      %v455 = vpop.f32.mrb[0].mxu0
      %v456 = vadd.f32 0.0, %v455
      %v457 = vpop.f32.mrb[0].mxu0
      %458 = vmatprep.mubr.bf16.mxu0 0
      %459 = vmatmul.mubr.bf16.gmra.mrb[0].mxu0 %v318
      %v460 = vpop.f32.mrb[0].mxu0
      %v461 = vadd.f32 0.0, %v460
      %v462 = vpop.f32.mrb[0].mxu0
      %v463 = vpop.f32.mrb[0].mxu0
      %v464 = vadd.f32 0.0, %v463
      %v465 = vpop.f32.mrb[0].mxu0
      %466 = vmatprep.mubr.bf16.mxu0 0
      %467 = vmatmul.mubr.bf16.gmra.mrb[0].mxu0 %v319
      %v468 = vpop.f32.mrb[0].mxu0
      %v469 = vadd.f32 0.0, %v468
      %v470 = vpop.f32.mrb[0].mxu0
      %v471 = vpop.f32.mrb[0].mxu0
      %v472 = vadd.f32 0.0, %v471
      %v473 = vpop.f32.mrb[0].mxu0
      %474 = vmatprep.mubr.bf16.mxu0 0
      %475 = vmatmul.mubr.bf16.gmra.mrb[0].mxu0 %v320
      %v476 = vpop.f32.mrb[0].mxu0
      %v477 = vadd.f32 0.0, %v476
      %v478 = vpop.f32.mrb[0].mxu0
      %v479 = vpop.f32.mrb[0].mxu0
      %v480 = vadd.f32 0.0, %v479
      %v481 = vpop.f32.mrb[0].mxu0
      %482 = vmatprep.mubr.bf16.mxu0 0
      %483 = vmatmul.mubr.bf16.gmra.mrb[0].mxu0 %v321
      %v484 = vpop.f32.mrb[0].mxu0
      %v485 = vadd.f32 0.0, %v484
      %v486 = vpop.f32.mrb[0].mxu0
      %v487 = vpop.f32.mrb[0].mxu0
      %v488 = vadd.f32 0.0, %v487
      %v489 = vpop.f32.mrb[0].mxu0
      %490 = vmatprep.mubr.bf16.mxu0 0
      %491 = vmatmul.mubr.bf16.gmra.mrb[0].mxu0 %v322
      %v492 = vpop.f32.mrb[0].mxu0
      %v493 = vadd.f32 0.0, %v492
      %v494 = vpop.f32.mrb[0].mxu0
      %v495 = vpop.f32.mrb[0].mxu0
      %v496 = vadd.f32 0.0, %v495
      %v497 = vpop.f32.mrb[0].mxu0
      %498 = vmatprep.mubr.bf16.mxu0 0
      %499 = vmatmul.mubr.bf16.gmra.mrb[0].mxu0 %v323
      %v500 = vpop.f32.mrb[0].mxu0
      %v501 = vadd.f32 0.0, %v500
      %v502 = vpop.f32.mrb[0].mxu0
      %v503 = vpop.f32.mrb[0].mxu0
      %v504 = vadd.f32 0.0, %v503
      %v505 = vpop.f32.mrb[0].mxu0
      %506 = vmatprep.mubr.bf16.mxu0 0
      %507 = vmatmul.mubr.bf16.gmra.mrb[0].mxu0 %v324
      %v508 = vpop.f32.mrb[0].mxu0
      %v509 = vadd.f32 0.0, %v508
      %v510 = vpop.f32.mrb[0].mxu0
      %v511 = vpop.f32.mrb[0].mxu0
      %v512 = vadd.f32 0.0, %v511
      %v513 = vpop.f32.mrb[0].mxu0
      %514 = vmatprep.mubr.bf16.mxu0 0
      %515 = vmatmul.mubr.bf16.gmra.mrb[0].mxu0 %v325
      %v516 = vpop.f32.mrb[0].mxu0
      %v517 = vadd.f32 0.0, %v516
      %v518 = vpop.f32.mrb[0].mxu0
      %v519 = vpop.f32.mrb[0].mxu0
      %v520 = vadd.f32 0.0, %v519
      %v521 = vpop.f32.mrb[0].mxu0
      %522 = vmatprep.mubr.bf16.mxu0 0
      %523 = vmatmul.mubr.bf16.gmra.mrb[0].mxu0 %v326
      %v524 = vpop.f32.mrb[0].mxu0
      %v525 = vadd.f32 0.0, %v524
      %v526 = vpop.f32.mrb[0].mxu0
      %v527 = vpop.f32.mrb[0].mxu0
      %v528 = vadd.f32 0.0, %v527
      %v529 = vpop.f32.mrb[0].mxu0
      %530 = vmatprep.mubr.bf16.mxu0 0
      %531 = vmatmul.mubr.bf16.gmra.mrb[0].mxu0 %v327
      %v532 = vpop.f32.mrb[0].mxu0
      %v533 = vadd.f32 0.0, %v532
      %v534 = vpop.f32.mrb[0].mxu0
      %v535 = vpop.f32.mrb[0].mxu0
      %v536 = vadd.f32 0.0, %v535
      %v537 = vpop.f32.mrb[0].mxu0
      %538 = vmatprep.mubr.bf16.mxu0 0
      %539 = vmatmul.mubr.bf16.gmra.mrb[0].mxu0 %v328
      %v540 = vpop.f32.mrb[0].mxu0
      %v541 = vadd.f32 0.0, %v540
      %v542 = vpop.f32.mrb[0].mxu0
      %v543 = vpop.f32.mrb[0].mxu0
      %v544 = vadd.f32 0.0, %v543
      %v545 = vpop.f32.mrb[0].mxu0
      %546 = vmatprep.mubr.bf16.mxu0 0
      %547 = vmatmul.mubr.bf16.gmra.mrb[0].mxu0 %v329
      %v548 = vpop.f32.mrb[0].mxu0
      %v549 = vadd.f32 0.0, %v548
      %v550 = vpop.f32.mrb[0].mxu0
      %v551 = vpop.f32.mrb[0].mxu0
      %v552 = vadd.f32 0.0, %v551
      %v553 = vpop.f32.mrb[0].mxu0
      %554 = vdwg.mxu0
      %v555 = vld [vmem:[%s2] sm:$0x1]
      %v557 = vlaneseq
      %v558 = vshrl.u32 %v557, 7
      %v559 = vsub.s32 0, %v558
      %v560 = vrot.slane %v555, %v559
      %v562 = vmul.f32 %v429, %v560
      %v563 = vmul.f32 %v432, %v560
      %v564 = vmul.f32 %v437, %v560
      %v565 = vmul.f32 %v440, %v560
      %v566 = vmul.f32 %v445, %v560
      %v567 = vmul.f32 %v448, %v560
      %v568 = vmul.f32 %v453, %v560
      %v569 = vmul.f32 %v456, %v560
      %v570 = vmul.f32 %v461, %v560
      %v571 = vmul.f32 %v464, %v560
      %v572 = vmul.f32 %v469, %v560
      %v573 = vmul.f32 %v472, %v560
      %v574 = vmul.f32 %v477, %v560
      %v575 = vmul.f32 %v480, %v560
      %v576 = vmul.f32 %v485, %v560
      %v577 = vmul.f32 %v488, %v560
      %v578 = vmul.f32 %v493, %v560
      %v579 = vmul.f32 %v496, %v560
      %v580 = vmul.f32 %v501, %v560
      %v581 = vmul.f32 %v504, %v560
      %v582 = vmul.f32 %v509, %v560
      %v583 = vmul.f32 %v512, %v560
      %v584 = vmul.f32 %v517, %v560
      %v585 = vmul.f32 %v520, %v560
      %v586 = vmul.f32 %v525, %v560
      %v587 = vmul.f32 %v528, %v560
      %v588 = vmul.f32 %v533, %v560
      %v589 = vmul.f32 %v536, %v560
      %v590 = vmul.f32 %v541, %v560
      %v591 = vmul.f32 %v544, %v560
      %v592 = vmul.f32 %v549, %v560
      %v593 = vmul.f32 %v552, %v560
      %v594 = vld [vmem:[%s3] sm:$0x1]
      %v596 = vlaneseq
      %v597 = vshrl.u32 %v596, 7
      %v598 = vsub.s32 0, %v597
      %v599 = vrot.slane %v594, %v598
      %v601 = vadd.f32 %v562, %v599
      %v602 = vadd.f32 %v563, %v599
      %v603 = vadd.f32 %v564, %v599
      %v604 = vadd.f32 %v565, %v599
      %v605 = vadd.f32 %v566, %v599
      %v606 = vadd.f32 %v567, %v599
      %v607 = vadd.f32 %v568, %v599
      %v608 = vadd.f32 %v569, %v599
      %v609 = vadd.f32 %v570, %v599
      %v610 = vadd.f32 %v571, %v599
      %v611 = vadd.f32 %v572, %v599
      %v612 = vadd.f32 %v573, %v599
      %v613 = vadd.f32 %v574, %v599
      %v614 = vadd.f32 %v575, %v599
      %v615 = vadd.f32 %v576, %v599
      %v616 = vadd.f32 %v577, %v599
      %v617 = vadd.f32 %v578, %v599
      %v618 = vadd.f32 %v579, %v599
      %v619 = vadd.f32 %v580, %v599
      %v620 = vadd.f32 %v581, %v599
      %v621 = vadd.f32 %v582, %v599
      %v622 = vadd.f32 %v583, %v599
      %v623 = vadd.f32 %v584, %v599
      %v624 = vadd.f32 %v585, %v599
      %v625 = vadd.f32 %v586, %v599
      %v626 = vadd.f32 %v587, %v599
      %v627 = vadd.f32 %v588, %v599
      %v628 = vadd.f32 %v589, %v599
      %v629 = vadd.f32 %v590, %v599
      %v630 = vadd.f32 %v591, %v599
      %v631 = vadd.f32 %v592, %v599
      %v632 = vadd.f32 %v593, %v599
      %v633 = vmax.f32 %v601, 0.0
      %v634 = vmax.f32 %v602, 0.0
      %v635 = vmax.f32 %v603, 0.0
      %v636 = vmax.f32 %v604, 0.0
      %v637 = vmax.f32 %v605, 0.0
      %v638 = vmax.f32 %v606, 0.0
      %v639 = vmax.f32 %v607, 0.0
      %v640 = vmax.f32 %v608, 0.0
      %v641 = vmax.f32 %v609, 0.0
      %v642 = vmax.f32 %v610, 0.0
      %v643 = vmax.f32 %v611, 0.0
      %v644 = vmax.f32 %v612, 0.0
      %v645 = vmax.f32 %v613, 0.0
      %v646 = vmax.f32 %v614, 0.0
      %v647 = vmax.f32 %v615, 0.0
      %v648 = vmax.f32 %v616, 0.0
      %v649 = vmax.f32 %v617, 0.0
      %v650 = vmax.f32 %v618, 0.0
      %v651 = vmax.f32 %v619, 0.0
      %v652 = vmax.f32 %v620, 0.0
      %v653 = vmax.f32 %v621, 0.0
      %v654 = vmax.f32 %v622, 0.0
      %v655 = vmax.f32 %v623, 0.0
      %v656 = vmax.f32 %v624, 0.0
      %v657 = vmax.f32 %v625, 0.0
      %v658 = vmax.f32 %v626, 0.0
      %v659 = vmax.f32 %v627, 0.0
      %v660 = vmax.f32 %v628, 0.0
      %v661 = vmax.f32 %v629, 0.0
      %v662 = vmax.f32 %v630, 0.0
      %v663 = vmax.f32 %v631, 0.0
      %v664 = vmax.f32 %v632, 0.0
      %665 = vst [vmem:[%s199] sm:$0xff] %v633
      %666 = vst [vmem:[%s199 + $0x8] sm:$0xff] %v634
      %667 = vst [vmem:[%s199 + $0x10] sm:$0xff] %v635
      %668 = vst [vmem:[%s199 + $0x18] sm:$0xff] %v636
      %669 = vst [vmem:[%s199 + $0x20] sm:$0xff] %v637
      %670 = vst [vmem:[%s199 + $0x28] sm:$0xff] %v638
      %671 = vst [vmem:[%s199 + $0x30] sm:$0xff] %v639
      %672 = vst [vmem:[%s199 + $0x38] sm:$0xff] %v640
      %673 = vst [vmem:[%s199 + $0x40] sm:$0xff] %v641
      %674 = vst [vmem:[%s199 + $0x48] sm:$0xff] %v642
      %675 = vst [vmem:[%s199 + $0x50] sm:$0xff] %v643
      %676 = vst [vmem:[%s199 + $0x58] sm:$0xff] %v644
      %677 = vst [vmem:[%s199 + $0x60] sm:$0xff] %v645
      %678 = vst [vmem:[%s199 + $0x68] sm:$0xff] %v646
      %679 = vst [vmem:[%s199 + $0x70] sm:$0xff] %v647
      %680 = vst [vmem:[%s199 + $0x78] sm:$0xff] %v648
      %681 = vst [vmem:[%s199 + $0x80] sm:$0xff] %v649
      %682 = vst [vmem:[%s199 + $0x88] sm:$0xff] %v650
      %683 = vst [vmem:[%s199 + $0x90] sm:$0xff] %v651
      %684 = vst [vmem:[%s199 + $0x98] sm:$0xff] %v652
      %685 = vst [vmem:[%s199 + $0xa0] sm:$0xff] %v653
      %686 = vst [vmem:[%s199 + $0xa8] sm:$0xff] %v654
      %687 = vst [vmem:[%s199 + $0xb0] sm:$0xff] %v655
      %688 = vst [vmem:[%s199 + $0xb8] sm:$0xff] %v656
      %689 = vst [vmem:[%s199 + $0xc0] sm:$0xff] %v657
      %690 = vst [vmem:[%s199 + $0xc8] sm:$0xff] %v658
      %691 = vst [vmem:[%s199 + $0xd0] sm:$0xff] %v659
      %692 = vst [vmem:[%s199 + $0xd8] sm:$0xff] %v660
      %693 = vst [vmem:[%s199 + $0xe0] sm:$0xff] %v661
      %694 = vst [vmem:[%s199 + $0xe8] sm:$0xff] %v662
      %695 = vst [vmem:[%s199 + $0xf0] sm:$0xff] %v663
      %696 = vst [vmem:[%s199 + $0xf8] sm:$0xff] %v664
      %s697 = smul.u32 32, %s15
      %p698 = scmp.lt.s32.totalorder %s697, 63
      %s699 = scalar_select %p698, %s697, 63
      %s700 = smul.addr %s699, 8
      %s701 = scalar_lea.vmem %s4, %s700
      // Predicated region
      $region37: #{fwd.2} parent=35 // pred_check
        %p702 = pneg %p122
      $region38: #{fwd.2} parent=35 // pred_check_branch
        %704 = sbr.rel (%p702) target = $region40
      $region39: #{fwd.2} parent=35 // pred_region
        %s705 = smul.u32 32, %s15
      $region40: #{fwd.2} parent=35 // pred_fallthru
        _
    $region36: #{fwd.2} parent=5 // pred_fallthru
      _
    %p706 = scmp.le.s32.totalorder 2, %s10
    // Predicated region
    $region41: #{fwd.2} parent=5 // pred_check
      %p707 = pneg %p706
    $region42: #{fwd.2} parent=5 // pred_check_branch
      %709 = sbr.rel (%p707) target = $region44
    $region43: #{fwd.2} parent=5 // pred_region
      %s710 = ssub.s32 %s10, 2
      // Predicated region
      $region45: #{fwd.2} parent=43 // pred_check
        %p711 = pneg %p128
      $region46: #{fwd.2} parent=43 // pred_check_branch
        %713 = sbr.rel (%p711) target = $region48
      $region47: #{fwd.2} parent=43 // pred_region
        %s714 = smul.u32 32, %s16
        %p715 = scmp.lt.s32.totalorder %s714, 63
        %s716 = scalar_select %p715, %s714, 63
        %s717 = smul.addr %s716, 8
        %s718 = scalar_lea.vmem %s4, %s717
      $region48: #{fwd.2} parent=43 // pred_fallthru
        _
    $region44: #{fwd.2} parent=5 // pred_fallthru
      _
  $region6: #{fwd.2} parent=0 // loop_footer
    %s14 = sadd.s32 1, %s10
  $region7: #{fwd.2} parent=0 // loop_footer_branch
    %9 = sbr.rel target = $region3
  $region8: #{fwd.2} parent=0 // loop_exit
    _

// kernel: fwd.3
$region0: #{fwd.3}
  #allocation0 [shape = 'u32[]', space=smem, size = 0x4, offset = 0x4, fixed_abs, tag = 'smem constant byte address 0x4 - core index']
  #allocation1 [shape = 'u32[144,128]{1,0:T(1,128)}', space=vmem, size = 0x12000, scoped, tag = 'internal scratch']
  %s0 = inlined_call_operand.vmem [shape: bf16[9,128,128], index: 0, kind: input, shape index: {}]
  %s1 = inlined_call_operand.vmem [shape: bf16[9,128,128], index: 1, kind: input, shape index: {}]
  %s2 = inlined_call_operand.vmem [shape: f32[1,128], index: 2, kind: input, shape index: {}]
  %s3 = inlined_call_operand.vmem [shape: f32[1,128], index: 3, kind: input, shape index: {}]
  %s4 = inlined_call_operand.hbm [shape: f32[128,128], index: 4, kind: output, shape index: {}]
  %s5 = sld [smem:[#allocation0]]
  $region90: #{fwd.3} parent=0
    _
  %s7 = ssub.s32 1, %s5
  %s8 = scalar_select 0, %s7, %s5
  $region1: #{fwd.3} parent=0
    #allocation2 [shape = 'u8[294912]{0}', space=vmem, size = 0x48000, scoped, tag = 'input window, operand 0']
    #allocation3 [shape = 'u8[65536]{0}', space=vmem, size = 0x10000, scoped, tag = 'output window, operand 0']
    #allocation4 [shape = 's32[2]{0}', space=sflag, size = 0x8, scoped, tag = 'scoped memory for fwd.3']
    %9 = vsyncpa [#allocation4], 0
    %s10 = scalar_lea.sflag [#allocation4], 1
    %11 = vsyncpa %s10, 0
    loop: start=0, step=1, limit=4
    $region2: #{fwd.3} parent=1 // loop_pre_header
      _
    $region3: #{fwd.3} parent=1 // loop_header
      %s13 = sphi 0, %s17
      %p14 = scmp.ge.s32.totalorder %s13, 4
      %s23 = sphi 0, %s25
      %s26 = sphi 0, %s23
      %s27 = sphi 0, %s26
      %s43 = sphi 0, %s27
      %s47 = sphi 0, %s47
      %s49 = sphi 0, %s47
      %s50 = sphi 0, %s49
      %s64 = sphi 0, %s50
      %s68 = sphi 0, %s68
      %s70 = sphi 0, %s68
      %s71 = sphi 0, %s70
      %s85 = sphi 0, %s71
      %s89 = sphi 0, %s89
      %s91 = sphi 0, %s89
      %s92 = sphi 0, %s91
      %s106 = sphi 0, %s92
      %s112 = sphi 0, %s114
      %s115 = sphi 0, %s112
      %s116 = sphi 0, %s115
      %s132 = sphi 0, %s116
    $region4: #{fwd.3} parent=1 // loop_header_branch
      %16 = sbr.rel (%p14) target = $region8
    $region5: #{fwd.3} parent=1 // loop_body
      %s18 = ssub.s32 %s13, 1
      %s19 = ssub.s32 %s13, 2
      %s20 = sadd.s32 %s13, 1
      %s21 = ssub.s32 %s13, %s20
      %p22 = scmp.eq.s32.totalorder %s21, 0
      %s24 = sadd.s32 %s23, 1
      %s25 = scalar_select %p22, %s23, %s24
      %p28 = pneg %p22
      %p29 = scmp.eq.s32.totalorder %s13, 1
      %p30 = por %p28, %p29
      %p31 = scmp.ne.s32.totalorder %s23, %s26
      %p32 = scmp.eq.s32.totalorder %s13, 0
      %p33 = por %p31, %p32
      %p34 = scmp.ne.s32.totalorder %s23, %s26
      %p35 = scmp.eq.s32.totalorder %s18, 1
      %p36 = por %p34, %p35
      %p37 = scmp.ne.s32.totalorder %s26, %s27
      %p38 = scmp.eq.s32.totalorder %s18, 0
      %p39 = por %p37, %p38
      %p40 = scmp.ne.s32.totalorder %s26, %s27
      %p41 = scmp.eq.s32.totalorder %s19, 1
      %p42 = por %p40, %p41
      %p44 = scmp.ne.s32.totalorder %s27, %s43
      %p45 = scmp.eq.s32.totalorder %s19, 0
      %p46 = por %p44, %p45
      %s48 = sadd.s32 %s47, 1
      %p51 = scmp.eq.s32.totalorder %s13, 1
      %p52 = scmp.ne.s32.totalorder %s47, %s49
      %p53 = scmp.eq.s32.totalorder %s13, 0
      %p54 = por %p52, %p53
      %p55 = scmp.ne.s32.totalorder %s47, %s49
      %p56 = scmp.eq.s32.totalorder %s18, 1
      %p57 = por %p55, %p56
      %p58 = scmp.ne.s32.totalorder %s49, %s50
      %p59 = scmp.eq.s32.totalorder %s18, 0
      %p60 = por %p58, %p59
      %p61 = scmp.ne.s32.totalorder %s49, %s50
      %p62 = scmp.eq.s32.totalorder %s19, 1
      %p63 = por %p61, %p62
      %p65 = scmp.ne.s32.totalorder %s50, %s64
      %p66 = scmp.eq.s32.totalorder %s19, 0
      %p67 = por %p65, %p66
      %s69 = sadd.s32 %s68, 1
      %p72 = scmp.eq.s32.totalorder %s13, 1
      %p73 = scmp.ne.s32.totalorder %s68, %s70
      %p74 = scmp.eq.s32.totalorder %s13, 0
      %p75 = por %p73, %p74
      %p76 = scmp.ne.s32.totalorder %s68, %s70
      %p77 = scmp.eq.s32.totalorder %s18, 1
      %p78 = por %p76, %p77
      %p79 = scmp.ne.s32.totalorder %s70, %s71
      %p80 = scmp.eq.s32.totalorder %s18, 0
      %p81 = por %p79, %p80
      %p82 = scmp.ne.s32.totalorder %s70, %s71
      %p83 = scmp.eq.s32.totalorder %s19, 1
      %p84 = por %p82, %p83
      %p86 = scmp.ne.s32.totalorder %s71, %s85
      %p87 = scmp.eq.s32.totalorder %s19, 0
      %p88 = por %p86, %p87
      %s90 = sadd.s32 %s89, 1
      %p93 = scmp.eq.s32.totalorder %s13, 1
      %p94 = scmp.ne.s32.totalorder %s89, %s91
      %p95 = scmp.eq.s32.totalorder %s13, 0
      %p96 = por %p94, %p95
      %p97 = scmp.ne.s32.totalorder %s89, %s91
      %p98 = scmp.eq.s32.totalorder %s18, 1
      %p99 = por %p97, %p98
      %p100 = scmp.ne.s32.totalorder %s91, %s92
      %p101 = scmp.eq.s32.totalorder %s18, 0
      %p102 = por %p100, %p101
      %p103 = scmp.ne.s32.totalorder %s91, %s92
      %p104 = scmp.eq.s32.totalorder %s19, 1
      %p105 = por %p103, %p104
      %p107 = scmp.ne.s32.totalorder %s92, %s106
      %p108 = scmp.eq.s32.totalorder %s19, 0
      %p109 = por %p107, %p108
      %s110 = ssub.s32 %s13, %s20
      %p111 = scmp.eq.s32.totalorder %s110, 0
      %s113 = sadd.s32 %s112, 1
      %s114 = scalar_select %p111, %s112, %s113
      %p117 = pneg %p111
      %p118 = scmp.eq.s32.totalorder %s13, 1
      %p119 = por %p117, %p118
      %p120 = scmp.ne.s32.totalorder %s112, %s115
      %p121 = scmp.eq.s32.totalorder %s13, 0
      %p122 = por %p120, %p121
      %p123 = scmp.ne.s32.totalorder %s112, %s115
      %p124 = scmp.eq.s32.totalorder %s18, 1
      %p125 = por %p123, %p124
      %p126 = scmp.ne.s32.totalorder %s115, %s116
      %p127 = scmp.eq.s32.totalorder %s18, 0
      %p128 = por %p126, %p127
      %p129 = scmp.ne.s32.totalorder %s115, %s116
      %p130 = scmp.eq.s32.totalorder %s19, 1
      %p131 = por %p129, %p130
      %p133 = scmp.ne.s32.totalorder %s116, %s132
      %p134 = scmp.eq.s32.totalorder %s19, 0
      %p135 = por %p133, %p134
      %p136 = scmp.le.s32.totalorder 1, %s13
      %p137 = scmp.lt.s32.totalorder %s13, 3
      %p138 = pnand %p136, %p137
      %p139 = pneg %p138
      // Predicated region
      $region9: #{fwd.3} parent=5 // pred_check
        _
      $region10: #{fwd.3} parent=5 // pred_check_branch
        %141 = sbr.rel (%p138) target = $region12
      $region11: #{fwd.3} parent=5 // pred_region
        %s142 = ssub.s32 %s13, 1
        // Predicated region
        $region13: #{fwd.3} parent=11 // pred_check
          %p143 = pneg %p60
        $region14: #{fwd.3} parent=11 // pred_check_branch
          %145 = sbr.rel (%p143) target = $region16
        $region15: #{fwd.3} parent=11 // pred_region
          _
        $region16: #{fwd.3} parent=11 // pred_fallthru
          _
        // Predicated region
        $region17: #{fwd.3} parent=11 // pred_check
          %p146 = pneg %p81
        $region18: #{fwd.3} parent=11 // pred_check_branch
          %148 = sbr.rel (%p146) target = $region20
        $region19: #{fwd.3} parent=11 // pred_region
          _
        $region20: #{fwd.3} parent=11 // pred_fallthru
          _
        // Predicated region
        $region21: #{fwd.3} parent=11 // pred_check
          %p149 = pneg %p102
        $region22: #{fwd.3} parent=11 // pred_check_branch
          %151 = sbr.rel (%p149) target = $region24
        $region23: #{fwd.3} parent=11 // pred_region
          _
        $region24: #{fwd.3} parent=11 // pred_fallthru
          _
      $region12: #{fwd.3} parent=5 // pred_fallthru
        _
      %p152 = scmp.lt.s32.totalorder %s13, 2
      // Predicated region
      $region25: #{fwd.3} parent=5 // pred_check
        %p153 = pneg %p152
      $region26: #{fwd.3} parent=5 // pred_check_branch
        %155 = sbr.rel (%p153) target = $region28
      $region27: #{fwd.3} parent=5 // pred_region
        // Predicated region
        $region29: #{fwd.3} parent=27 // pred_check
          %p156 = pneg %p33
        $region30: #{fwd.3} parent=27 // pred_check_branch
          %158 = sbr.rel (%p156) target = $region32
        $region31: #{fwd.3} parent=27 // pred_region
          %s159 = sand.u32 %s23, 1
          %s160 = sand.u32 %s23, 1
          %s161 = smul.addr %s160, 288
          %s162 = scalar_lea.vmem [#allocation2], %s161
          %s163 = smul.u32 8, %s13
          %s164 = smul.addr %s163, 4
          %s165 = scalar_lea.vmem %s0, %s164
          // Predicated region
          $region33: #{fwd.3} parent=31 // pred_check
            _
          $region34: #{fwd.3} parent=31 // pred_check_branch
            %167 = sbr.rel (0) target = $region36
          $region35: #{fwd.3} parent=31 // pred_region
            // Predicated region
            $region37: #{fwd.3} parent=35 // pred_check
              _
            $region38: #{fwd.3} parent=35 // pred_check_branch
              %169 = sbr.rel target = $region40
            $region39: #{fwd.3} parent=35 // pred_region
              // Predicated region
              $region52: #{fwd.3} parent=39 // pred_check
                _
              $region53: #{fwd.3} parent=39 // pred_check_branch
                %326 = sbr.rel (0) target = $region55
              $region54: #{fwd.3} parent=39 // pred_region
                loop: start=0, step=1, limit=1
                $region56: #{fwd.3} parent=54 // loop_pre_header
                  _
                $region57: #{fwd.3} parent=54 // loop_header
                  %s328 = sphi 0, %s332
                  %p329 = scmp.ge.s32.totalorder %s328, 1
                  %s333 = sphi %s165, %s165
                  %s334 = sphi %s162, %s162
                $region58: #{fwd.3} parent=54 // loop_header_branch
                  %331 = sbr.rel (%p329) target = $region62
                $region59: #{fwd.3} parent=54 // loop_body
                  _
                $region60: #{fwd.3} parent=54 // loop_footer
                  %s332 = sadd.s32 1, %s328
                $region61: #{fwd.3} parent=54 // loop_footer_branch
                  %327 = sbr.rel target = $region57
                $region62: #{fwd.3} parent=54 // loop_exit
                  _
                loop: start=0, step=1, limit=1
                $region63: #{fwd.3} parent=54 // loop_pre_header
                  _
                $region64: #{fwd.3} parent=54 // loop_header
                  %s337 = sphi 0, %s341
                  %p338 = scmp.ge.s32.totalorder %s337, 1
                  %s342 = sphi %s165, %s165
                  %s343 = sphi %s162, %s162
                $region65: #{fwd.3} parent=54 // loop_header_branch
                  %340 = sbr.rel (%p338) target = $region69
                $region66: #{fwd.3} parent=54 // loop_body
                  %v344 = vld [vmem:[%s342] sm:$0xf]
                  %345 = vst [vmem:[%s343] sm:$0xf] %v344
                  %v346 = vld [vmem:[%s342 + $0x4] sm:$0xf]
                  %347 = vst [vmem:[%s343 + $0x4] sm:$0xf] %v346
                  %v348 = vld [vmem:[%s342 + $0x8] sm:$0xf]
                  %349 = vst [vmem:[%s343 + $0x8] sm:$0xf] %v348
                  %v350 = vld [vmem:[%s342 + $0xc] sm:$0xf]
                  %351 = vst [vmem:[%s343 + $0xc] sm:$0xf] %v350
                  %v352 = vld [vmem:[%s342 + $0x10] sm:$0xf]
                  %353 = vst [vmem:[%s343 + $0x10] sm:$0xf] %v352
                  %v354 = vld [vmem:[%s342 + $0x14] sm:$0xf]
                  %355 = vst [vmem:[%s343 + $0x14] sm:$0xf] %v354
                  %v356 = vld [vmem:[%s342 + $0x18] sm:$0xf]
                  %357 = vst [vmem:[%s343 + $0x18] sm:$0xf] %v356
                  %v358 = vld [vmem:[%s342 + $0x1c] sm:$0xf]
                  %359 = vst [vmem:[%s343 + $0x1c] sm:$0xf] %v358
                  %v360 = vld [vmem:[%s342 + $0x40] sm:$0xf]
                  %361 = vst [vmem:[%s343 + $0x20] sm:$0xf] %v360
                  %v362 = vld [vmem:[%s342 + $0x44] sm:$0xf]
                  %363 = vst [vmem:[%s343 + $0x24] sm:$0xf] %v362
                  %v364 = vld [vmem:[%s342 + $0x48] sm:$0xf]
                  %365 = vst [vmem:[%s343 + $0x28] sm:$0xf] %v364
                  %v366 = vld [vmem:[%s342 + $0x4c] sm:$0xf]
                  %367 = vst [vmem:[%s343 + $0x2c] sm:$0xf] %v366
                  %v368 = vld [vmem:[%s342 + $0x50] sm:$0xf]
                  %369 = vst [vmem:[%s343 + $0x30] sm:$0xf] %v368
                  %v370 = vld [vmem:[%s342 + $0x54] sm:$0xf]
                  %371 = vst [vmem:[%s343 + $0x34] sm:$0xf] %v370
                  %v372 = vld [vmem:[%s342 + $0x58] sm:$0xf]
                  %373 = vst [vmem:[%s343 + $0x38] sm:$0xf] %v372
                  %v374 = vld [vmem:[%s342 + $0x5c] sm:$0xf]
                  %375 = vst [vmem:[%s343 + $0x3c] sm:$0xf] %v374
                  %v376 = vld [vmem:[%s342 + $0x80] sm:$0xf]
                  %377 = vst [vmem:[%s343 + $0x40] sm:$0xf] %v376
                  %v378 = vld [vmem:[%s342 + $0x84] sm:$0xf]
                  %379 = vst [vmem:[%s343 + $0x44] sm:$0xf] %v378
                  %v380 = vld [vmem:[%s342 + $0x88] sm:$0xf]
                  %381 = vst [vmem:[%s343 + $0x48] sm:$0xf] %v380
                  %v382 = vld [vmem:[%s342 + $0x8c] sm:$0xf]
                  %383 = vst [vmem:[%s343 + $0x4c] sm:$0xf] %v382
                  %v384 = vld [vmem:[%s342 + $0x90] sm:$0xf]
                  %385 = vst [vmem:[%s343 + $0x50] sm:$0xf] %v384
                  %v386 = vld [vmem:[%s342 + $0x94] sm:$0xf]
                  %387 = vst [vmem:[%s343 + $0x54] sm:$0xf] %v386
                  %v388 = vld [vmem:[%s342 + $0x98] sm:$0xf]
                  %389 = vst [vmem:[%s343 + $0x58] sm:$0xf] %v388
                  %v390 = vld [vmem:[%s342 + $0x9c] sm:$0xf]
                  %391 = vst [vmem:[%s343 + $0x5c] sm:$0xf] %v390
                  %v392 = vld [vmem:[%s342 + $0xc0] sm:$0xf]
                  %393 = vst [vmem:[%s343 + $0x60] sm:$0xf] %v392
                  %v394 = vld [vmem:[%s342 + $0xc4] sm:$0xf]
                  %395 = vst [vmem:[%s343 + $0x64] sm:$0xf] %v394
                  %v396 = vld [vmem:[%s342 + $0xc8] sm:$0xf]
                  %397 = vst [vmem:[%s343 + $0x68] sm:$0xf] %v396
                  %v398 = vld [vmem:[%s342 + $0xcc] sm:$0xf]
                  %399 = vst [vmem:[%s343 + $0x6c] sm:$0xf] %v398
                  %v400 = vld [vmem:[%s342 + $0xd0] sm:$0xf]
                  %401 = vst [vmem:[%s343 + $0x70] sm:$0xf] %v400
                  %v402 = vld [vmem:[%s342 + $0xd4] sm:$0xf]
                  %403 = vst [vmem:[%s343 + $0x74] sm:$0xf] %v402
                  %v404 = vld [vmem:[%s342 + $0xd8] sm:$0xf]
                  %405 = vst [vmem:[%s343 + $0x78] sm:$0xf] %v404
                  %v406 = vld [vmem:[%s342 + $0xdc] sm:$0xf]
                  %407 = vst [vmem:[%s343 + $0x7c] sm:$0xf] %v406
                  %v408 = vld [vmem:[%s342 + $0x100] sm:$0xf]
                  %409 = vst [vmem:[%s343 + $0x80] sm:$0xf] %v408
                  %v410 = vld [vmem:[%s342 + $0x104] sm:$0xf]
                  %411 = vst [vmem:[%s343 + $0x84] sm:$0xf] %v410
                  %v412 = vld [vmem:[%s342 + $0x108] sm:$0xf]
                  %413 = vst [vmem:[%s343 + $0x88] sm:$0xf] %v412
                  %v414 = vld [vmem:[%s342 + $0x10c] sm:$0xf]
                  %415 = vst [vmem:[%s343 + $0x8c] sm:$0xf] %v414
                  %v416 = vld [vmem:[%s342 + $0x110] sm:$0xf]
                  %417 = vst [vmem:[%s343 + $0x90] sm:$0xf] %v416
                  %v418 = vld [vmem:[%s342 + $0x114] sm:$0xf]
                  %419 = vst [vmem:[%s343 + $0x94] sm:$0xf] %v418
                  %v420 = vld [vmem:[%s342 + $0x118] sm:$0xf]
                  %421 = vst [vmem:[%s343 + $0x98] sm:$0xf] %v420
                  %v422 = vld [vmem:[%s342 + $0x11c] sm:$0xf]
                  %423 = vst [vmem:[%s343 + $0x9c] sm:$0xf] %v422
                  %v424 = vld [vmem:[%s342 + $0x140] sm:$0xf]
                  %425 = vst [vmem:[%s343 + $0xa0] sm:$0xf] %v424
                  %v426 = vld [vmem:[%s342 + $0x144] sm:$0xf]
                  %427 = vst [vmem:[%s343 + $0xa4] sm:$0xf] %v426
                  %v428 = vld [vmem:[%s342 + $0x148] sm:$0xf]
                  %429 = vst [vmem:[%s343 + $0xa8] sm:$0xf] %v428
                  %v430 = vld [vmem:[%s342 + $0x14c] sm:$0xf]
                  %431 = vst [vmem:[%s343 + $0xac] sm:$0xf] %v430
                  %v432 = vld [vmem:[%s342 + $0x150] sm:$0xf]
                  %433 = vst [vmem:[%s343 + $0xb0] sm:$0xf] %v432
                  %v434 = vld [vmem:[%s342 + $0x154] sm:$0xf]
                  %435 = vst [vmem:[%s343 + $0xb4] sm:$0xf] %v434
                  %v436 = vld [vmem:[%s342 + $0x158] sm:$0xf]
                  %437 = vst [vmem:[%s343 + $0xb8] sm:$0xf] %v436
                  %v438 = vld [vmem:[%s342 + $0x15c] sm:$0xf]
                  %439 = vst [vmem:[%s343 + $0xbc] sm:$0xf] %v438
                  %v440 = vld [vmem:[%s342 + $0x180] sm:$0xf]
                  %441 = vst [vmem:[%s343 + $0xc0] sm:$0xf] %v440
                  %v442 = vld [vmem:[%s342 + $0x184] sm:$0xf]
                  %443 = vst [vmem:[%s343 + $0xc4] sm:$0xf] %v442
                  %v444 = vld [vmem:[%s342 + $0x188] sm:$0xf]
                  %445 = vst [vmem:[%s343 + $0xc8] sm:$0xf] %v444
                  %v446 = vld [vmem:[%s342 + $0x18c] sm:$0xf]
                  %447 = vst [vmem:[%s343 + $0xcc] sm:$0xf] %v446
                  %v448 = vld [vmem:[%s342 + $0x190] sm:$0xf]
                  %449 = vst [vmem:[%s343 + $0xd0] sm:$0xf] %v448
                  %v450 = vld [vmem:[%s342 + $0x194] sm:$0xf]
                  %451 = vst [vmem:[%s343 + $0xd4] sm:$0xf] %v450
                  %v452 = vld [vmem:[%s342 + $0x198] sm:$0xf]
                  %453 = vst [vmem:[%s343 + $0xd8] sm:$0xf] %v452
                  %v454 = vld [vmem:[%s342 + $0x19c] sm:$0xf]
                  %455 = vst [vmem:[%s343 + $0xdc] sm:$0xf] %v454
                  %v456 = vld [vmem:[%s342 + $0x1c0] sm:$0xf]
                  %457 = vst [vmem:[%s343 + $0xe0] sm:$0xf] %v456
                  %v458 = vld [vmem:[%s342 + $0x1c4] sm:$0xf]
                  %459 = vst [vmem:[%s343 + $0xe4] sm:$0xf] %v458
                  %v460 = vld [vmem:[%s342 + $0x1c8] sm:$0xf]
                  %461 = vst [vmem:[%s343 + $0xe8] sm:$0xf] %v460
                  %v462 = vld [vmem:[%s342 + $0x1cc] sm:$0xf]
                  %463 = vst [vmem:[%s343 + $0xec] sm:$0xf] %v462
                  %v464 = vld [vmem:[%s342 + $0x1d0] sm:$0xf]
                  %465 = vst [vmem:[%s343 + $0xf0] sm:$0xf] %v464
                  %v466 = vld [vmem:[%s342 + $0x1d4] sm:$0xf]
                  %467 = vst [vmem:[%s343 + $0xf4] sm:$0xf] %v466
                  %v468 = vld [vmem:[%s342 + $0x1d8] sm:$0xf]
                  %469 = vst [vmem:[%s343 + $0xf8] sm:$0xf] %v468
                  %v470 = vld [vmem:[%s342 + $0x1dc] sm:$0xf]
                  %471 = vst [vmem:[%s343 + $0xfc] sm:$0xf] %v470
                  %v472 = vld [vmem:[%s342 + $0x200] sm:$0xf]
                  %473 = vst [vmem:[%s343 + $0x100] sm:$0xf] %v472
                  %v474 = vld [vmem:[%s342 + $0x204] sm:$0xf]
                  %475 = vst [vmem:[%s343 + $0x104] sm:$0xf] %v474
                  %v476 = vld [vmem:[%s342 + $0x208] sm:$0xf]
                  %477 = vst [vmem:[%s343 + $0x108] sm:$0xf] %v476
                  %v478 = vld [vmem:[%s342 + $0x20c] sm:$0xf]
                  %479 = vst [vmem:[%s343 + $0x10c] sm:$0xf] %v478
                  %v480 = vld [vmem:[%s342 + $0x210] sm:$0xf]
                  %481 = vst [vmem:[%s343 + $0x110] sm:$0xf] %v480
                  %v482 = vld [vmem:[%s342 + $0x214] sm:$0xf]
                  %483 = vst [vmem:[%s343 + $0x114] sm:$0xf] %v482
                  %v484 = vld [vmem:[%s342 + $0x218] sm:$0xf]
                  %485 = vst [vmem:[%s343 + $0x118] sm:$0xf] %v484
                  %v486 = vld [vmem:[%s342 + $0x21c] sm:$0xf]
                  %487 = vst [vmem:[%s343 + $0x11c] sm:$0xf] %v486
                $region67: #{fwd.3} parent=54 // loop_footer
                  %s341 = sadd.s32 1, %s337
                $region68: #{fwd.3} parent=54 // loop_footer_branch
                  %336 = sbr.rel target = $region64
                $region69: #{fwd.3} parent=54 // loop_exit
                  _
              $region55: #{fwd.3} parent=39 // pred_fallthru
                _
            $region40: #{fwd.3} parent=35 // pred_fallthru
              _
            // Predicated region
            $region41: #{fwd.3} parent=35 // pred_check
              _
            $region42: #{fwd.3} parent=35 // pred_check_branch
              %171 = sbr.rel (0) target = $region44
            $region43: #{fwd.3} parent=35 // pred_region
              loop: start=0, step=1, limit=1
              $region45: #{fwd.3} parent=43 // loop_pre_header
                _
              $region46: #{fwd.3} parent=43 // loop_header
                %s174 = sphi 0, %s178
                %p175 = scmp.ge.s32.totalorder %s174, 1
                %s179 = sphi %s165, %s165
                %s180 = sphi %s162, %s162
              $region47: #{fwd.3} parent=43 // loop_header_branch
                %177 = sbr.rel (%p175) target = $region51
              $region48: #{fwd.3} parent=43 // loop_body
                %v181 = vld [vmem:[%s179] sm:$0xf]
                %182 = vst [vmem:[%s180] sm:$0xf] %v181
                %v183 = vld [vmem:[%s179 + $0x4] sm:$0xf]
                %184 = vst [vmem:[%s180 + $0x4] sm:$0xf] %v183
                %v185 = vld [vmem:[%s179 + $0x8] sm:$0xf]
                %186 = vst [vmem:[%s180 + $0x8] sm:$0xf] %v185
                %v187 = vld [vmem:[%s179 + $0xc] sm:$0xf]
                %188 = vst [vmem:[%s180 + $0xc] sm:$0xf] %v187
                %v189 = vld [vmem:[%s179 + $0x10] sm:$0xf]
                %190 = vst [vmem:[%s180 + $0x10] sm:$0xf] %v189
                %v191 = vld [vmem:[%s179 + $0x14] sm:$0xf]
                %192 = vst [vmem:[%s180 + $0x14] sm:$0xf] %v191
                %v193 = vld [vmem:[%s179 + $0x18] sm:$0xf]
                %194 = vst [vmem:[%s180 + $0x18] sm:$0xf] %v193
                %v195 = vld [vmem:[%s179 + $0x1c] sm:$0xf]
                %196 = vst [vmem:[%s180 + $0x1c] sm:$0xf] %v195
                %v197 = vld [vmem:[%s179 + $0x40] sm:$0xf]
                %198 = vst [vmem:[%s180 + $0x20] sm:$0xf] %v197
                %v199 = vld [vmem:[%s179 + $0x44] sm:$0xf]
                %200 = vst [vmem:[%s180 + $0x24] sm:$0xf] %v199
                %v201 = vld [vmem:[%s179 + $0x48] sm:$0xf]
                %202 = vst [vmem:[%s180 + $0x28] sm:$0xf] %v201
                %v203 = vld [vmem:[%s179 + $0x4c] sm:$0xf]
                %204 = vst [vmem:[%s180 + $0x2c] sm:$0xf] %v203
                %v205 = vld [vmem:[%s179 + $0x50] sm:$0xf]
                %206 = vst [vmem:[%s180 + $0x30] sm:$0xf] %v205
                %v207 = vld [vmem:[%s179 + $0x54] sm:$0xf]
                %208 = vst [vmem:[%s180 + $0x34] sm:$0xf] %v207
                %v209 = vld [vmem:[%s179 + $0x58] sm:$0xf]
                %210 = vst [vmem:[%s180 + $0x38] sm:$0xf] %v209
                %v211 = vld [vmem:[%s179 + $0x5c] sm:$0xf]
                %212 = vst [vmem:[%s180 + $0x3c] sm:$0xf] %v211
                %v213 = vld [vmem:[%s179 + $0x80] sm:$0xf]
                %214 = vst [vmem:[%s180 + $0x40] sm:$0xf] %v213
                %v215 = vld [vmem:[%s179 + $0x84] sm:$0xf]
                %216 = vst [vmem:[%s180 + $0x44] sm:$0xf] %v215
                %v217 = vld [vmem:[%s179 + $0x88] sm:$0xf]
                %218 = vst [vmem:[%s180 + $0x48] sm:$0xf] %v217
                %v219 = vld [vmem:[%s179 + $0x8c] sm:$0xf]
                %220 = vst [vmem:[%s180 + $0x4c] sm:$0xf] %v219
                %v221 = vld [vmem:[%s179 + $0x90] sm:$0xf]
                %222 = vst [vmem:[%s180 + $0x50] sm:$0xf] %v221
                %v223 = vld [vmem:[%s179 + $0x94] sm:$0xf]
                %224 = vst [vmem:[%s180 + $0x54] sm:$0xf] %v223
                %v225 = vld [vmem:[%s179 + $0x98] sm:$0xf]
                %226 = vst [vmem:[%s180 + $0x58] sm:$0xf] %v225
                %v227 = vld [vmem:[%s179 + $0x9c] sm:$0xf]
                %228 = vst [vmem:[%s180 + $0x5c] sm:$0xf] %v227
                %v229 = vld [vmem:[%s179 + $0xc0] sm:$0xf]
                %230 = vst [vmem:[%s180 + $0x60] sm:$0xf] %v229
                %v231 = vld [vmem:[%s179 + $0xc4] sm:$0xf]
                %232 = vst [vmem:[%s180 + $0x64] sm:$0xf] %v231
                %v233 = vld [vmem:[%s179 + $0xc8] sm:$0xf]
                %234 = vst [vmem:[%s180 + $0x68] sm:$0xf] %v233
                %v235 = vld [vmem:[%s179 + $0xcc] sm:$0xf]
                %236 = vst [vmem:[%s180 + $0x6c] sm:$0xf] %v235
                %v237 = vld [vmem:[%s179 + $0xd0] sm:$0xf]
                %238 = vst [vmem:[%s180 + $0x70] sm:$0xf] %v237
                %v239 = vld [vmem:[%s179 + $0xd4] sm:$0xf]
                %240 = vst [vmem:[%s180 + $0x74] sm:$0xf] %v239
                %v241 = vld [vmem:[%s179 + $0xd8] sm:$0xf]
                %242 = vst [vmem:[%s180 + $0x78] sm:$0xf] %v241
                %v243 = vld [vmem:[%s179 + $0xdc] sm:$0xf]
                %244 = vst [vmem:[%s180 + $0x7c] sm:$0xf] %v243
                %v245 = vld [vmem:[%s179 + $0x100] sm:$0xf]
                %246 = vst [vmem:[%s180 + $0x80] sm:$0xf] %v245
                %v247 = vld [vmem:[%s179 + $0x104] sm:$0xf]
                %248 = vst [vmem:[%s180 + $0x84] sm:$0xf] %v247
                %v249 = vld [vmem:[%s179 + $0x108] sm:$0xf]
                %250 = vst [vmem:[%s180 + $0x88] sm:$0xf] %v249
                %v251 = vld [vmem:[%s179 + $0x10c] sm:$0xf]
                %252 = vst [vmem:[%s180 + $0x8c] sm:$0xf] %v251
                %v253 = vld [vmem:[%s179 + $0x110] sm:$0xf]
                %254 = vst [vmem:[%s180 + $0x90] sm:$0xf] %v253
                %v255 = vld [vmem:[%s179 + $0x114] sm:$0xf]
                %256 = vst [vmem:[%s180 + $0x94] sm:$0xf] %v255
                %v257 = vld [vmem:[%s179 + $0x118] sm:$0xf]
                %258 = vst [vmem:[%s180 + $0x98] sm:$0xf] %v257
                %v259 = vld [vmem:[%s179 + $0x11c] sm:$0xf]
                %260 = vst [vmem:[%s180 + $0x9c] sm:$0xf] %v259
                %v261 = vld [vmem:[%s179 + $0x140] sm:$0xf]
                %262 = vst [vmem:[%s180 + $0xa0] sm:$0xf] %v261
                %v263 = vld [vmem:[%s179 + $0x144] sm:$0xf]
                %264 = vst [vmem:[%s180 + $0xa4] sm:$0xf] %v263
                %v265 = vld [vmem:[%s179 + $0x148] sm:$0xf]
                %266 = vst [vmem:[%s180 + $0xa8] sm:$0xf] %v265
                %v267 = vld [vmem:[%s179 + $0x14c] sm:$0xf]
                %268 = vst [vmem:[%s180 + $0xac] sm:$0xf] %v267
                %v269 = vld [vmem:[%s179 + $0x150] sm:$0xf]
                %270 = vst [vmem:[%s180 + $0xb0] sm:$0xf] %v269
                %v271 = vld [vmem:[%s179 + $0x154] sm:$0xf]
                %272 = vst [vmem:[%s180 + $0xb4] sm:$0xf] %v271
                %v273 = vld [vmem:[%s179 + $0x158] sm:$0xf]
                %274 = vst [vmem:[%s180 + $0xb8] sm:$0xf] %v273
                %v275 = vld [vmem:[%s179 + $0x15c] sm:$0xf]
                %276 = vst [vmem:[%s180 + $0xbc] sm:$0xf] %v275
                %v277 = vld [vmem:[%s179 + $0x180] sm:$0xf]
                %278 = vst [vmem:[%s180 + $0xc0] sm:$0xf] %v277
                %v279 = vld [vmem:[%s179 + $0x184] sm:$0xf]
                %280 = vst [vmem:[%s180 + $0xc4] sm:$0xf] %v279
                %v281 = vld [vmem:[%s179 + $0x188] sm:$0xf]
                %282 = vst [vmem:[%s180 + $0xc8] sm:$0xf] %v281
                %v283 = vld [vmem:[%s179 + $0x18c] sm:$0xf]
                %284 = vst [vmem:[%s180 + $0xcc] sm:$0xf] %v283
                %v285 = vld [vmem:[%s179 + $0x190] sm:$0xf]
                %286 = vst [vmem:[%s180 + $0xd0] sm:$0xf] %v285
                %v287 = vld [vmem:[%s179 + $0x194] sm:$0xf]
                %288 = vst [vmem:[%s180 + $0xd4] sm:$0xf] %v287
                %v289 = vld [vmem:[%s179 + $0x198] sm:$0xf]
                %290 = vst [vmem:[%s180 + $0xd8] sm:$0xf] %v289
                %v291 = vld [vmem:[%s179 + $0x19c] sm:$0xf]
                %292 = vst [vmem:[%s180 + $0xdc] sm:$0xf] %v291
                %v293 = vld [vmem:[%s179 + $0x1c0] sm:$0xf]
                %294 = vst [vmem:[%s180 + $0xe0] sm:$0xf] %v293
                %v295 = vld [vmem:[%s179 + $0x1c4] sm:$0xf]
                %296 = vst [vmem:[%s180 + $0xe4] sm:$0xf] %v295
                %v297 = vld [vmem:[%s179 + $0x1c8] sm:$0xf]
                %298 = vst [vmem:[%s180 + $0xe8] sm:$0xf] %v297
                %v299 = vld [vmem:[%s179 + $0x1cc] sm:$0xf]
                %300 = vst [vmem:[%s180 + $0xec] sm:$0xf] %v299
                %v301 = vld [vmem:[%s179 + $0x1d0] sm:$0xf]
                %302 = vst [vmem:[%s180 + $0xf0] sm:$0xf] %v301
                %v303 = vld [vmem:[%s179 + $0x1d4] sm:$0xf]
                %304 = vst [vmem:[%s180 + $0xf4] sm:$0xf] %v303
                %v305 = vld [vmem:[%s179 + $0x1d8] sm:$0xf]
                %306 = vst [vmem:[%s180 + $0xf8] sm:$0xf] %v305
                %v307 = vld [vmem:[%s179 + $0x1dc] sm:$0xf]
                %308 = vst [vmem:[%s180 + $0xfc] sm:$0xf] %v307
                %v309 = vld [vmem:[%s179 + $0x200] sm:$0xf]
                %310 = vst [vmem:[%s180 + $0x100] sm:$0xf] %v309
                %v311 = vld [vmem:[%s179 + $0x204] sm:$0xf]
                %312 = vst [vmem:[%s180 + $0x104] sm:$0xf] %v311
                %v313 = vld [vmem:[%s179 + $0x208] sm:$0xf]
                %314 = vst [vmem:[%s180 + $0x108] sm:$0xf] %v313
                %v315 = vld [vmem:[%s179 + $0x20c] sm:$0xf]
                %316 = vst [vmem:[%s180 + $0x10c] sm:$0xf] %v315
                %v317 = vld [vmem:[%s179 + $0x210] sm:$0xf]
                %318 = vst [vmem:[%s180 + $0x110] sm:$0xf] %v317
                %v319 = vld [vmem:[%s179 + $0x214] sm:$0xf]
                %320 = vst [vmem:[%s180 + $0x114] sm:$0xf] %v319
                %v321 = vld [vmem:[%s179 + $0x218] sm:$0xf]
                %322 = vst [vmem:[%s180 + $0x118] sm:$0xf] %v321
                %v323 = vld [vmem:[%s179 + $0x21c] sm:$0xf]
                %324 = vst [vmem:[%s180 + $0x11c] sm:$0xf] %v323
              $region49: #{fwd.3} parent=43 // loop_footer
                %s178 = sadd.s32 1, %s174
              $region50: #{fwd.3} parent=43 // loop_footer_branch
                %173 = sbr.rel target = $region46
              $region51: #{fwd.3} parent=43 // loop_exit
                _
            $region44: #{fwd.3} parent=35 // pred_fallthru
              _
          $region36: #{fwd.3} parent=31 // pred_fallthru
            _
          %488 = vnop
        $region32: #{fwd.3} parent=27 // pred_fallthru
          _
      $region28: #{fwd.3} parent=5 // pred_fallthru
        _
      %p489 = scmp.le.s32.totalorder 1, %s13
      %p490 = scmp.lt.s32.totalorder %s13, 3
      %p491 = pnand %p489, %p490
      %p492 = pneg %p491
      // Predicated region
      $region70: #{fwd.3} parent=5 // pred_check
        _
      $region71: #{fwd.3} parent=5 // pred_check_branch
        %494 = sbr.rel (%p491) target = $region73
      $region72: #{fwd.3} parent=5 // pred_region
        %s495 = ssub.s32 %s13, 1
        %s496 = sand.u32 %s26, 1
        %s497 = sand.u32 %s26, 1
        %s498 = smul.addr %s497, 288
        %s499 = scalar_lea.vmem [#allocation2], %s498
        // Predicated region
        $region74: #{fwd.3} parent=72 // pred_check
          %p500 = pneg %p39
        $region75: #{fwd.3} parent=72 // pred_check_branch
          %502 = sbr.rel (%p500) target = $region77
        $region76: #{fwd.3} parent=72 // pred_region
          _
        $region77: #{fwd.3} parent=72 // pred_fallthru
          _
        %s503 = sand.u32 %s26, 1
        %s504 = sand.u32 %s26, 1
        %s505 = smul.addr %s504, 288
        %s506 = scalar_lea.vmem [#allocation2], %s505
        %p507 = pneg %p39
        %p508 = pneg %p36
        %p509 = pneg %p60
        %p510 = pneg %p57
        %p511 = pneg %p81
        %p512 = pneg %p78
        %p513 = pneg %p102
        %p514 = pneg %p99
        %p515 = pneg %p128
        %p516 = pneg %p125
        %s517 = sand.u32 %s115, 1
        %s518 = scalar_lea.sflag [#allocation4], %s517
        %s519 = sand.u32 %s115, 1
        %s520 = smul.addr %s519, 64
        %s521 = scalar_lea.vmem [#allocation3], %s520
        %s522 = smul.u32 8, %s18
        %s523 = smul.u32 8, %s18
        %v525 = vld [vmem:[%s499] sm:$0xf]
        %v526 = vld [vmem:[%s499 + $0x4] sm:$0xf]
        %v527 = vld [vmem:[%s499 + $0x8] sm:$0xf]
        %v528 = vld [vmem:[%s499 + $0xc] sm:$0xf]
        %v529 = vld [vmem:[%s499 + $0x10] sm:$0xf]
        %v530 = vld [vmem:[%s499 + $0x14] sm:$0xf]
        %v531 = vld [vmem:[%s499 + $0x18] sm:$0xf]
        %v532 = vld [vmem:[%s499 + $0x1c] sm:$0xf]
        %v533 = vld [vmem:[%s1] sm:$0xf]
        %v534 = vld [vmem:[%s1 + $0x4] sm:$0xf]
        %v535 = vld [vmem:[%s1 + $0x8] sm:$0xf]
        %v536 = vld [vmem:[%s1 + $0xc] sm:$0xf]
        %v537 = vld [vmem:[%s1 + $0x10] sm:$0xf]
        %v538 = vld [vmem:[%s1 + $0x14] sm:$0xf]
        %v539 = vld [vmem:[%s1 + $0x18] sm:$0xf]
        %v540 = vld [vmem:[%s1 + $0x1c] sm:$0xf]
        %v541 = vld [vmem:[%s1 + $0x20] sm:$0xf]
        %v542 = vld [vmem:[%s1 + $0x24] sm:$0xf]
        %v543 = vld [vmem:[%s1 + $0x28] sm:$0xf]
        %v544 = vld [vmem:[%s1 + $0x2c] sm:$0xf]
        %v545 = vld [vmem:[%s1 + $0x30] sm:$0xf]
        %v546 = vld [vmem:[%s1 + $0x34] sm:$0xf]
        %v547 = vld [vmem:[%s1 + $0x38] sm:$0xf]
        %v548 = vld [vmem:[%s1 + $0x3c] sm:$0xf]
        %s549 = scalar_lea.vmem %s499, 32 [#allocation2]
        %v550 = vld [vmem:[%s549] sm:$0xf]
        %v551 = vld [vmem:[%s549 + $0x4] sm:$0xf]
        %v552 = vld [vmem:[%s549 + $0x8] sm:$0xf]
        %v553 = vld [vmem:[%s549 + $0xc] sm:$0xf]
        %v554 = vld [vmem:[%s549 + $0x10] sm:$0xf]
        %v555 = vld [vmem:[%s549 + $0x14] sm:$0xf]
        %v556 = vld [vmem:[%s549 + $0x18] sm:$0xf]
        %v557 = vld [vmem:[%s549 + $0x1c] sm:$0xf]
        %s558 = scalar_lea.vmem %s1, 64
        %v559 = vld [vmem:[%s558] sm:$0xf]
        %v560 = vld [vmem:[%s558 + $0x4] sm:$0xf]
        %v561 = vld [vmem:[%s558 + $0x8] sm:$0xf]
        %v562 = vld [vmem:[%s558 + $0xc] sm:$0xf]
        %v563 = vld [vmem:[%s558 + $0x10] sm:$0xf]
        %v564 = vld [vmem:[%s558 + $0x14] sm:$0xf]
        %v565 = vld [vmem:[%s558 + $0x18] sm:$0xf]
        %v566 = vld [vmem:[%s558 + $0x1c] sm:$0xf]
        %v567 = vld [vmem:[%s558 + $0x20] sm:$0xf]
        %v568 = vld [vmem:[%s558 + $0x24] sm:$0xf]
        %v569 = vld [vmem:[%s558 + $0x28] sm:$0xf]
        %v570 = vld [vmem:[%s558 + $0x2c] sm:$0xf]
        %v571 = vld [vmem:[%s558 + $0x30] sm:$0xf]
        %v572 = vld [vmem:[%s558 + $0x34] sm:$0xf]
        %v573 = vld [vmem:[%s558 + $0x38] sm:$0xf]
        %v574 = vld [vmem:[%s558 + $0x3c] sm:$0xf]
        %v583 = vunpack.c.l.b16 %v550
        %v584 = vunpack.c.l.b16 %v551
        %v585 = vunpack.c.l.b16 %v552
        %v586 = vunpack.c.l.b16 %v553
        %v587 = vunpack.c.l.b16 %v554
        %v588 = vunpack.c.l.b16 %v555
        %v589 = vunpack.c.l.b16 %v556
        %v590 = vunpack.c.l.b16 %v557
        %v591 = vpack.c.b16 %v584, %v583
        %v592 = vpack.c.b16 %v586, %v585
        %v593 = vpack.c.b16 %v588, %v587
        %v594 = vpack.c.b16 %v590, %v589
        %v615 = vunpack.c.l.b16 %v559
        %v616 = vunpack.c.l.b16 %v560
        %v617 = vunpack.c.l.b16 %v561
        %v618 = vunpack.c.l.b16 %v562
        %v619 = vunpack.c.l.b16 %v563
        %v620 = vunpack.c.l.b16 %v564
        %v621 = vunpack.c.l.b16 %v565
        %v622 = vunpack.c.l.b16 %v566
        %v623 = vunpack.c.l.b16 %v567
        %v624 = vunpack.c.l.b16 %v568
        %v625 = vunpack.c.l.b16 %v569
        %v626 = vunpack.c.l.b16 %v570
        %v627 = vunpack.c.l.b16 %v571
        %v628 = vunpack.c.l.b16 %v572
        %v629 = vunpack.c.l.b16 %v573
        %v630 = vunpack.c.l.b16 %v574
        %v631 = vpack.c.b16 %v616, %v615
        %v632 = vpack.c.b16 %v618, %v617
        %v633 = vpack.c.b16 %v620, %v619
        %v634 = vpack.c.b16 %v622, %v621
        %v635 = vpack.c.b16 %v624, %v623
        %v636 = vpack.c.b16 %v626, %v625
        %v637 = vpack.c.b16 %v628, %v627
        %v638 = vpack.c.b16 %v630, %v629
        %647 = vmatprep.subr.bf16.mxu0 0
        %648 = vmatpush1.bf16.msra.mxu0 %v631
        %649 = vmatprep.subr.bf16.mxu0 0
        %650 = vmatpush1.bf16.msra.mxu0 %v632
        %651 = vmatprep.subr.bf16.mxu0 0
        %652 = vmatpush1.bf16.msra.mxu0 %v633
        %653 = vmatprep.subr.bf16.mxu0 0
        %654 = vmatpush1.bf16.msra.mxu0 %v634
        %655 = vmatprep.subr.bf16.mxu0 0
        %656 = vmatpush1.bf16.msra.mxu0 %v635
        %657 = vmatprep.subr.bf16.mxu0 0
        %658 = vmatpush1.bf16.msra.mxu0 %v636
        %659 = vmatprep.subr.bf16.mxu0 0
        %660 = vmatpush1.bf16.msra.mxu0 %v637
        %661 = vmatprep.subr.bf16.mxu0 0
        %662 = vmatpush1.bf16.msra.mxu0 %v638
        %663 = vmatprep.subr.bf16.mxu0 0
        %664 = vmatpush1.bf16.msra.mxu0 0
        %665 = vmatprep.subr.bf16.mxu0 0
        %666 = vmatpush1.bf16.msra.mxu0 0
        %667 = vmatprep.subr.bf16.mxu0 0
        %668 = vmatpush1.bf16.msra.mxu0 0
        %669 = vmatprep.subr.bf16.mxu0 0
        %670 = vmatpush1.bf16.msra.mxu0 0
        %671 = vmatprep.subr.bf16.mxu0 0
        %672 = vmatpush1.bf16.msra.mxu0 0
        %673 = vmatprep.subr.bf16.mxu0 0
        %674 = vmatpush1.bf16.msra.mxu0 0
        %675 = vmatprep.subr.bf16.mxu0 0
        %676 = vmatpush1.bf16.msra.mxu0 0
        %677 = vmatprep.subr.bf16.mxu0 0
        %678 = vmatpush1.bf16.msra.mxu0 0
        %679 = vmatprep.mubr.bf16.mxu0 0
        %680 = vmatmul.mubr.bf16.gmra.mrb[0].mxu0 %v591
        %v681 = vpop.f32.mrb[0].mxu0
        %v682 = vadd.f32 0.0, %v681
        %v683 = vpop.f32.mrb[0].mxu0
        %v684 = vpop.f32.mrb[0].mxu0
        %v685 = vadd.f32 0.0, %v684
        %v686 = vpop.f32.mrb[0].mxu0
        %687 = vmatprep.mubr.bf16.mxu0 0
        %688 = vmatmul.mubr.bf16.gmra.mrb[0].mxu0 %v592
        %v689 = vpop.f32.mrb[0].mxu0
        %v690 = vadd.f32 0.0, %v689
        %v691 = vpop.f32.mrb[0].mxu0
        %v692 = vpop.f32.mrb[0].mxu0
        %v693 = vadd.f32 0.0, %v692
        %v694 = vpop.f32.mrb[0].mxu0
        %695 = vmatprep.mubr.bf16.mxu0 0
        %696 = vmatmul.mubr.bf16.gmra.mrb[0].mxu0 %v593
        %v697 = vpop.f32.mrb[0].mxu0
        %v698 = vadd.f32 0.0, %v697
        %v699 = vpop.f32.mrb[0].mxu0
        %v700 = vpop.f32.mrb[0].mxu0
        %v701 = vadd.f32 0.0, %v700
        %v702 = vpop.f32.mrb[0].mxu0
        %703 = vmatprep.mubr.bf16.mxu0 0
        %704 = vmatmul.mubr.bf16.gmra.mrb[0].mxu0 %v594
        %v705 = vpop.f32.mrb[0].mxu0
        %v706 = vadd.f32 0.0, %v705
        %v707 = vpop.f32.mrb[0].mxu0
        %v708 = vpop.f32.mrb[0].mxu0
        %v709 = vadd.f32 0.0, %v708
        %v710 = vpop.f32.mrb[0].mxu0
        %711 = vdwg.mxu0
        %v720 = vunpack.c.l.b16 %v525
        %v721 = vunpack.c.l.b16 %v526
        %v722 = vunpack.c.l.b16 %v527
        %v723 = vunpack.c.l.b16 %v528
        %v724 = vunpack.c.l.b16 %v529
        %v725 = vunpack.c.l.b16 %v530
        %v726 = vunpack.c.l.b16 %v531
        %v727 = vunpack.c.l.b16 %v532
        %v728 = vpack.c.b16 %v721, %v720
        %v729 = vpack.c.b16 %v723, %v722
        %v730 = vpack.c.b16 %v725, %v724
        %v731 = vpack.c.b16 %v727, %v726
        %v752 = vunpack.c.l.b16 %v533
        %v753 = vunpack.c.l.b16 %v534
        %v754 = vunpack.c.l.b16 %v535
        %v755 = vunpack.c.l.b16 %v536
        %v756 = vunpack.c.l.b16 %v537
        %v757 = vunpack.c.l.b16 %v538
        %v758 = vunpack.c.l.b16 %v539
        %v759 = vunpack.c.l.b16 %v540
        %v760 = vunpack.c.l.b16 %v541
        %v761 = vunpack.c.l.b16 %v542
        %v762 = vunpack.c.l.b16 %v543
        %v763 = vunpack.c.l.b16 %v544
        %v764 = vunpack.c.l.b16 %v545
        %v765 = vunpack.c.l.b16 %v546
        %v766 = vunpack.c.l.b16 %v547
        %v767 = vunpack.c.l.b16 %v548
        %v768 = vpack.c.b16 %v753, %v752
        %v769 = vpack.c.b16 %v755, %v754
        %v770 = vpack.c.b16 %v757, %v756
        %v771 = vpack.c.b16 %v759, %v758
        %v772 = vpack.c.b16 %v761, %v760
        %v773 = vpack.c.b16 %v763, %v762
        %v774 = vpack.c.b16 %v765, %v764
        %v775 = vpack.c.b16 %v767, %v766
        %784 = vmatprep.subr.bf16.mxu0 0
        %785 = vmatpush1.bf16.msra.mxu0 %v768
        %786 = vmatprep.subr.bf16.mxu0 0
        %787 = vmatpush1.bf16.msra.mxu0 %v769
        %788 = vmatprep.subr.bf16.mxu0 0
        %789 = vmatpush1.bf16.msra.mxu0 %v770
        %790 = vmatprep.subr.bf16.mxu0 0
        %791 = vmatpush1.bf16.msra.mxu0 %v771
        %792 = vmatprep.subr.bf16.mxu0 0
        %793 = vmatpush1.bf16.msra.mxu0 %v772
        %794 = vmatprep.subr.bf16.mxu0 0
        %795 = vmatpush1.bf16.msra.mxu0 %v773
        %796 = vmatprep.subr.bf16.mxu0 0
        %797 = vmatpush1.bf16.msra.mxu0 %v774
        %798 = vmatprep.subr.bf16.mxu0 0
        %799 = vmatpush1.bf16.msra.mxu0 %v775
        %800 = vmatprep.subr.bf16.mxu0 0
        %801 = vmatpush1.bf16.msra.mxu0 0
        %802 = vmatprep.subr.bf16.mxu0 0
        %803 = vmatpush1.bf16.msra.mxu0 0
        %804 = vmatprep.subr.bf16.mxu0 0
        %805 = vmatpush1.bf16.msra.mxu0 0
        %806 = vmatprep.subr.bf16.mxu0 0
        %807 = vmatpush1.bf16.msra.mxu0 0
        %808 = vmatprep.subr.bf16.mxu0 0
        %809 = vmatpush1.bf16.msra.mxu0 0
        %810 = vmatprep.subr.bf16.mxu0 0
        %811 = vmatpush1.bf16.msra.mxu0 0
        %812 = vmatprep.subr.bf16.mxu0 0
        %813 = vmatpush1.bf16.msra.mxu0 0
        %814 = vmatprep.subr.bf16.mxu0 0
        %815 = vmatpush1.bf16.msra.mxu0 0
        %816 = vmatprep.mubr.bf16.mxu0 0
        %817 = vmatmul.mubr.bf16.gmra.mrb[0].mxu0 %v728
        %v818 = vpop.f32.mrb[0].mxu0
        %v819 = vadd.f32 %v682, %v818
        %v820 = vpop.f32.mrb[0].mxu0
        %v821 = vpop.f32.mrb[0].mxu0
        %v822 = vadd.f32 %v685, %v821
        %v823 = vpop.f32.mrb[0].mxu0
        %824 = vmatprep.mubr.bf16.mxu0 0
        %825 = vmatmul.mubr.bf16.gmra.mrb[0].mxu0 %v729
        %v826 = vpop.f32.mrb[0].mxu0
        %v827 = vadd.f32 %v690, %v826
        %v828 = vpop.f32.mrb[0].mxu0
        %v829 = vpop.f32.mrb[0].mxu0
        %v830 = vadd.f32 %v693, %v829
        %v831 = vpop.f32.mrb[0].mxu0
        %832 = vmatprep.mubr.bf16.mxu0 0
        %833 = vmatmul.mubr.bf16.gmra.mrb[0].mxu0 %v730
        %v834 = vpop.f32.mrb[0].mxu0
        %v835 = vadd.f32 %v698, %v834
        %v836 = vpop.f32.mrb[0].mxu0
        %v837 = vpop.f32.mrb[0].mxu0
        %v838 = vadd.f32 %v701, %v837
        %v839 = vpop.f32.mrb[0].mxu0
        %840 = vmatprep.mubr.bf16.mxu0 0
        %841 = vmatmul.mubr.bf16.gmra.mrb[0].mxu0 %v731
        %v842 = vpop.f32.mrb[0].mxu0
        %v843 = vadd.f32 %v706, %v842
        %v844 = vpop.f32.mrb[0].mxu0
        %v845 = vpop.f32.mrb[0].mxu0
        %v846 = vadd.f32 %v709, %v845
        %v847 = vpop.f32.mrb[0].mxu0
        %848 = vdwg.mxu0
        %s849 = scalar_lea.vmem %s499, 64 [#allocation2]
        %v850 = vld [vmem:[%s849] sm:$0xf]
        %v851 = vld [vmem:[%s849 + $0x4] sm:$0xf]
        %v852 = vld [vmem:[%s849 + $0x8] sm:$0xf]
        %v853 = vld [vmem:[%s849 + $0xc] sm:$0xf]
        %v854 = vld [vmem:[%s849 + $0x10] sm:$0xf]
        %v855 = vld [vmem:[%s849 + $0x14] sm:$0xf]
        %v856 = vld [vmem:[%s849 + $0x18] sm:$0xf]
        %v857 = vld [vmem:[%s849 + $0x1c] sm:$0xf]
        %s858 = scalar_lea.vmem %s1, 128
        %v859 = vld [vmem:[%s858] sm:$0xf]
        %v860 = vld [vmem:[%s858 + $0x4] sm:$0xf]
        %v861 = vld [vmem:[%s858 + $0x8] sm:$0xf]
        %v862 = vld [vmem:[%s858 + $0xc] sm:$0xf]
        %v863 = vld [vmem:[%s858 + $0x10] sm:$0xf]
        %v864 = vld [vmem:[%s858 + $0x14] sm:$0xf]
        %v865 = vld [vmem:[%s858 + $0x18] sm:$0xf]
        %v866 = vld [vmem:[%s858 + $0x1c] sm:$0xf]
        %v867 = vld [vmem:[%s858 + $0x20] sm:$0xf]
        %v868 = vld [vmem:[%s858 + $0x24] sm:$0xf]
        %v869 = vld [vmem:[%s858 + $0x28] sm:$0xf]
        %v870 = vld [vmem:[%s858 + $0x2c] sm:$0xf]
        %v871 = vld [vmem:[%s858 + $0x30] sm:$0xf]
        %v872 = vld [vmem:[%s858 + $0x34] sm:$0xf]
        %v873 = vld [vmem:[%s858 + $0x38] sm:$0xf]
        %v874 = vld [vmem:[%s858 + $0x3c] sm:$0xf]
        %v883 = vunpack.c.l.b16 %v850
        %v884 = vunpack.c.l.b16 %v851
        %v885 = vunpack.c.l.b16 %v852
        %v886 = vunpack.c.l.b16 %v853
        %v887 = vunpack.c.l.b16 %v854
        %v888 = vunpack.c.l.b16 %v855
        %v889 = vunpack.c.l.b16 %v856
        %v890 = vunpack.c.l.b16 %v857
        %v891 = vpack.c.b16 %v884, %v883
        %v892 = vpack.c.b16 %v886, %v885
        %v893 = vpack.c.b16 %v888, %v887
        %v894 = vpack.c.b16 %v890, %v889
        %v915 = vunpack.c.l.b16 %v859
        %v916 = vunpack.c.l.b16 %v860
        %v917 = vunpack.c.l.b16 %v861
        %v918 = vunpack.c.l.b16 %v862
        %v919 = vunpack.c.l.b16 %v863
        %v920 = vunpack.c.l.b16 %v864
        %v921 = vunpack.c.l.b16 %v865
        %v922 = vunpack.c.l.b16 %v866
        %v923 = vunpack.c.l.b16 %v867
        %v924 = vunpack.c.l.b16 %v868
        %v925 = vunpack.c.l.b16 %v869
        %v926 = vunpack.c.l.b16 %v870
        %v927 = vunpack.c.l.b16 %v871
        %v928 = vunpack.c.l.b16 %v872
        %v929 = vunpack.c.l.b16 %v873
        %v930 = vunpack.c.l.b16 %v874
        %v931 = vpack.c.b16 %v916, %v915
        %v932 = vpack.c.b16 %v918, %v917
        %v933 = vpack.c.b16 %v920, %v919
        %v934 = vpack.c.b16 %v922, %v921
        %v935 = vpack.c.b16 %v924, %v923
        %v936 = vpack.c.b16 %v926, %v925
        %v937 = vpack.c.b16 %v928, %v927
        %v938 = vpack.c.b16 %v930, %v929
        %947 = vmatprep.subr.bf16.mxu0 0
        %948 = vmatpush1.bf16.msra.mxu0 %v931
        %949 = vmatprep.subr.bf16.mxu0 0
        %950 = vmatpush1.bf16.msra.mxu0 %v932
        %951 = vmatprep.subr.bf16.mxu0 0
        %952 = vmatpush1.bf16.msra.mxu0 %v933
        %953 = vmatprep.subr.bf16.mxu0 0
        %954 = vmatpush1.bf16.msra.mxu0 %v934
        %955 = vmatprep.subr.bf16.mxu0 0
        %956 = vmatpush1.bf16.msra.mxu0 %v935
        %957 = vmatprep.subr.bf16.mxu0 0
        %958 = vmatpush1.bf16.msra.mxu0 %v936
        %959 = vmatprep.subr.bf16.mxu0 0
        %960 = vmatpush1.bf16.msra.mxu0 %v937
        %961 = vmatprep.subr.bf16.mxu0 0
        %962 = vmatpush1.bf16.msra.mxu0 %v938
        %963 = vmatprep.subr.bf16.mxu0 0
        %964 = vmatpush1.bf16.msra.mxu0 0
        %965 = vmatprep.subr.bf16.mxu0 0
        %966 = vmatpush1.bf16.msra.mxu0 0
        %967 = vmatprep.subr.bf16.mxu0 0
        %968 = vmatpush1.bf16.msra.mxu0 0
        %969 = vmatprep.subr.bf16.mxu0 0
        %970 = vmatpush1.bf16.msra.mxu0 0
        %971 = vmatprep.subr.bf16.mxu0 0
        %972 = vmatpush1.bf16.msra.mxu0 0
        %973 = vmatprep.subr.bf16.mxu0 0
        %974 = vmatpush1.bf16.msra.mxu0 0
        %975 = vmatprep.subr.bf16.mxu0 0
        %976 = vmatpush1.bf16.msra.mxu0 0
        %977 = vmatprep.subr.bf16.mxu0 0
        %978 = vmatpush1.bf16.msra.mxu0 0
        %979 = vmatprep.mubr.bf16.mxu0 0
        %980 = vmatmul.mubr.bf16.gmra.mrb[0].mxu0 %v891
        %v981 = vpop.f32.mrb[0].mxu0
        %v982 = vadd.f32 0.0, %v981
        %v983 = vpop.f32.mrb[0].mxu0
        %v984 = vpop.f32.mrb[0].mxu0
        %v985 = vadd.f32 0.0, %v984
        %v986 = vpop.f32.mrb[0].mxu0
        %987 = vmatprep.mubr.bf16.mxu0 0
        %988 = vmatmul.mubr.bf16.gmra.mrb[0].mxu0 %v892
        %v989 = vpop.f32.mrb[0].mxu0
        %v990 = vadd.f32 0.0, %v989
        %v991 = vpop.f32.mrb[0].mxu0
        %v992 = vpop.f32.mrb[0].mxu0
        %v993 = vadd.f32 0.0, %v992
        %v994 = vpop.f32.mrb[0].mxu0
        %995 = vmatprep.mubr.bf16.mxu0 0
        %996 = vmatmul.mubr.bf16.gmra.mrb[0].mxu0 %v893
        %v997 = vpop.f32.mrb[0].mxu0
        %v998 = vadd.f32 0.0, %v997
        %v999 = vpop.f32.mrb[0].mxu0
        %v1000 = vpop.f32.mrb[0].mxu0
        %v1001 = vadd.f32 0.0, %v1000
        %v1002 = vpop.f32.mrb[0].mxu0
        %1003 = vmatprep.mubr.bf16.mxu0 0
        %1004 = vmatmul.mubr.bf16.gmra.mrb[0].mxu0 %v894
        %v1005 = vpop.f32.mrb[0].mxu0
        %v1006 = vadd.f32 0.0, %v1005
        %v1007 = vpop.f32.mrb[0].mxu0
        %v1008 = vpop.f32.mrb[0].mxu0
        %v1009 = vadd.f32 0.0, %v1008
        %v1010 = vpop.f32.mrb[0].mxu0
        %1011 = vdwg.mxu0
        %v1012 = vadd.f32 %v819, %v982
        %v1013 = vadd.f32 %v822, %v985
        %v1014 = vadd.f32 %v827, %v990
        %v1015 = vadd.f32 %v830, %v993
        %v1016 = vadd.f32 %v835, %v998
        %v1017 = vadd.f32 %v838, %v1001
        %v1018 = vadd.f32 %v843, %v1006
        %v1019 = vadd.f32 %v846, %v1009
        %s1020 = scalar_lea.vmem %s499, 96 [#allocation2]
        %v1021 = vld [vmem:[%s1020] sm:$0xf]
        %v1022 = vld [vmem:[%s1020 + $0x4] sm:$0xf]
        %v1023 = vld [vmem:[%s1020 + $0x8] sm:$0xf]
        %v1024 = vld [vmem:[%s1020 + $0xc] sm:$0xf]
        %v1025 = vld [vmem:[%s1020 + $0x10] sm:$0xf]
        %v1026 = vld [vmem:[%s1020 + $0x14] sm:$0xf]
        %v1027 = vld [vmem:[%s1020 + $0x18] sm:$0xf]
        %v1028 = vld [vmem:[%s1020 + $0x1c] sm:$0xf]
        %s1029 = scalar_lea.vmem %s1, 192
        %v1030 = vld [vmem:[%s1029] sm:$0xf]
        %v1031 = vld [vmem:[%s1029 + $0x4] sm:$0xf]
        %v1032 = vld [vmem:[%s1029 + $0x8] sm:$0xf]
        %v1033 = vld [vmem:[%s1029 + $0xc] sm:$0xf]
        %v1034 = vld [vmem:[%s1029 + $0x10] sm:$0xf]
        %v1035 = vld [vmem:[%s1029 + $0x14] sm:$0xf]
        %v1036 = vld [vmem:[%s1029 + $0x18] sm:$0xf]
        %v1037 = vld [vmem:[%s1029 + $0x1c] sm:$0xf]
        %v1038 = vld [vmem:[%s1029 + $0x20] sm:$0xf]
        %v1039 = vld [vmem:[%s1029 + $0x24] sm:$0xf]
        %v1040 = vld [vmem:[%s1029 + $0x28] sm:$0xf]
        %v1041 = vld [vmem:[%s1029 + $0x2c] sm:$0xf]
        %v1042 = vld [vmem:[%s1029 + $0x30] sm:$0xf]
        %v1043 = vld [vmem:[%s1029 + $0x34] sm:$0xf]
        %v1044 = vld [vmem:[%s1029 + $0x38] sm:$0xf]
        %v1045 = vld [vmem:[%s1029 + $0x3c] sm:$0xf]
        %v1054 = vunpack.c.l.b16 %v1021
        %v1055 = vunpack.c.l.b16 %v1022
        %v1056 = vunpack.c.l.b16 %v1023
        %v1057 = vunpack.c.l.b16 %v1024
        %v1058 = vunpack.c.l.b16 %v1025
        %v1059 = vunpack.c.l.b16 %v1026
        %v1060 = vunpack.c.l.b16 %v1027
        %v1061 = vunpack.c.l.b16 %v1028
        %v1062 = vpack.c.b16 %v1055, %v1054
        %v1063 = vpack.c.b16 %v1057, %v1056
        %v1064 = vpack.c.b16 %v1059, %v1058
        %v1065 = vpack.c.b16 %v1061, %v1060
        %v1086 = vunpack.c.l.b16 %v1030
        %v1087 = vunpack.c.l.b16 %v1031
        %v1088 = vunpack.c.l.b16 %v1032
        %v1089 = vunpack.c.l.b16 %v1033
        %v1090 = vunpack.c.l.b16 %v1034
        %v1091 = vunpack.c.l.b16 %v1035
        %v1092 = vunpack.c.l.b16 %v1036
        %v1093 = vunpack.c.l.b16 %v1037
        %v1094 = vunpack.c.l.b16 %v1038
        %v1095 = vunpack.c.l.b16 %v1039
        %v1096 = vunpack.c.l.b16 %v1040
        %v1097 = vunpack.c.l.b16 %v1041
        %v1098 = vunpack.c.l.b16 %v1042
        %v1099 = vunpack.c.l.b16 %v1043
        %v1100 = vunpack.c.l.b16 %v1044
        %v1101 = vunpack.c.l.b16 %v1045
        %v1102 = vpack.c.b16 %v1087, %v1086
        %v1103 = vpack.c.b16 %v1089, %v1088
        %v1104 = vpack.c.b16 %v1091, %v1090
        %v1105 = vpack.c.b16 %v1093, %v1092
        %v1106 = vpack.c.b16 %v1095, %v1094
        %v1107 = vpack.c.b16 %v1097, %v1096
        %v1108 = vpack.c.b16 %v1099, %v1098
        %v1109 = vpack.c.b16 %v1101, %v1100
        %1118 = vmatprep.subr.bf16.mxu0 0
        %1119 = vmatpush1.bf16.msra.mxu0 %v1102
        %1120 = vmatprep.subr.bf16.mxu0 0
        %1121 = vmatpush1.bf16.msra.mxu0 %v1103
        %1122 = vmatprep.subr.bf16.mxu0 0
        %1123 = vmatpush1.bf16.msra.mxu0 %v1104
        %1124 = vmatprep.subr.bf16.mxu0 0
        %1125 = vmatpush1.bf16.msra.mxu0 %v1105
        %1126 = vmatprep.subr.bf16.mxu0 0
        %1127 = vmatpush1.bf16.msra.mxu0 %v1106
        %1128 = vmatprep.subr.bf16.mxu0 0
        %1129 = vmatpush1.bf16.msra.mxu0 %v1107
        %1130 = vmatprep.subr.bf16.mxu0 0
        %1131 = vmatpush1.bf16.msra.mxu0 %v1108
        %1132 = vmatprep.subr.bf16.mxu0 0
        %1133 = vmatpush1.bf16.msra.mxu0 %v1109
        %1134 = vmatprep.subr.bf16.mxu0 0
        %1135 = vmatpush1.bf16.msra.mxu0 0
        %1136 = vmatprep.subr.bf16.mxu0 0
        %1137 = vmatpush1.bf16.msra.mxu0 0
        %1138 = vmatprep.subr.bf16.mxu0 0
        %1139 = vmatpush1.bf16.msra.mxu0 0
        %1140 = vmatprep.subr.bf16.mxu0 0
        %1141 = vmatpush1.bf16.msra.mxu0 0
        %1142 = vmatprep.subr.bf16.mxu0 0
        %1143 = vmatpush1.bf16.msra.mxu0 0
        %1144 = vmatprep.subr.bf16.mxu0 0
        %1145 = vmatpush1.bf16.msra.mxu0 0
        %1146 = vmatprep.subr.bf16.mxu0 0
        %1147 = vmatpush1.bf16.msra.mxu0 0
        %1148 = vmatprep.subr.bf16.mxu0 0
        %1149 = vmatpush1.bf16.msra.mxu0 0
        %1150 = vmatprep.mubr.bf16.mxu0 0
        %1151 = vmatmul.mubr.bf16.gmra.mrb[0].mxu0 %v1062
        %v1152 = vpop.f32.mrb[0].mxu0
        %v1153 = vadd.f32 0.0, %v1152
        %v1154 = vpop.f32.mrb[0].mxu0
        %v1155 = vpop.f32.mrb[0].mxu0
        %v1156 = vadd.f32 0.0, %v1155
        %v1157 = vpop.f32.mrb[0].mxu0
        %1158 = vmatprep.mubr.bf16.mxu0 0
        %1159 = vmatmul.mubr.bf16.gmra.mrb[0].mxu0 %v1063
        %v1160 = vpop.f32.mrb[0].mxu0
        %v1161 = vadd.f32 0.0, %v1160
        %v1162 = vpop.f32.mrb[0].mxu0
        %v1163 = vpop.f32.mrb[0].mxu0
        %v1164 = vadd.f32 0.0, %v1163
        %v1165 = vpop.f32.mrb[0].mxu0
        %1166 = vmatprep.mubr.bf16.mxu0 0
        %1167 = vmatmul.mubr.bf16.gmra.mrb[0].mxu0 %v1064
        %v1168 = vpop.f32.mrb[0].mxu0
        %v1169 = vadd.f32 0.0, %v1168
        %v1170 = vpop.f32.mrb[0].mxu0
        %v1171 = vpop.f32.mrb[0].mxu0
        %v1172 = vadd.f32 0.0, %v1171
        %v1173 = vpop.f32.mrb[0].mxu0
        %1174 = vmatprep.mubr.bf16.mxu0 0
        %1175 = vmatmul.mubr.bf16.gmra.mrb[0].mxu0 %v1065
        %v1176 = vpop.f32.mrb[0].mxu0
        %v1177 = vadd.f32 0.0, %v1176
        %v1178 = vpop.f32.mrb[0].mxu0
        %v1179 = vpop.f32.mrb[0].mxu0
        %v1180 = vadd.f32 0.0, %v1179
        %v1181 = vpop.f32.mrb[0].mxu0
        %1182 = vdwg.mxu0
        %v1183 = vadd.f32 %v1012, %v1153
        %v1184 = vadd.f32 %v1013, %v1156
        %v1185 = vadd.f32 %v1014, %v1161
        %v1186 = vadd.f32 %v1015, %v1164
        %v1187 = vadd.f32 %v1016, %v1169
        %v1188 = vadd.f32 %v1017, %v1172
        %v1189 = vadd.f32 %v1018, %v1177
        %v1190 = vadd.f32 %v1019, %v1180
        %s1191 = scalar_lea.vmem %s499, 128 [#allocation2]
        %v1192 = vld [vmem:[%s1191] sm:$0xf]
        %v1193 = vld [vmem:[%s1191 + $0x4] sm:$0xf]
        %v1194 = vld [vmem:[%s1191 + $0x8] sm:$0xf]
        %v1195 = vld [vmem:[%s1191 + $0xc] sm:$0xf]
        %v1196 = vld [vmem:[%s1191 + $0x10] sm:$0xf]
        %v1197 = vld [vmem:[%s1191 + $0x14] sm:$0xf]
        %v1198 = vld [vmem:[%s1191 + $0x18] sm:$0xf]
        %v1199 = vld [vmem:[%s1191 + $0x1c] sm:$0xf]
        %s1200 = scalar_lea.vmem %s1, 256
        %v1201 = vld [vmem:[%s1200] sm:$0xf]
        %v1202 = vld [vmem:[%s1200 + $0x4] sm:$0xf]
        %v1203 = vld [vmem:[%s1200 + $0x8] sm:$0xf]
        %v1204 = vld [vmem:[%s1200 + $0xc] sm:$0xf]
        %v1205 = vld [vmem:[%s1200 + $0x10] sm:$0xf]
        %v1206 = vld [vmem:[%s1200 + $0x14] sm:$0xf]
        %v1207 = vld [vmem:[%s1200 + $0x18] sm:$0xf]
        %v1208 = vld [vmem:[%s1200 + $0x1c] sm:$0xf]
        %v1209 = vld [vmem:[%s1200 + $0x20] sm:$0xf]
        %v1210 = vld [vmem:[%s1200 + $0x24] sm:$0xf]
        %v1211 = vld [vmem:[%s1200 + $0x28] sm:$0xf]
        %v1212 = vld [vmem:[%s1200 + $0x2c] sm:$0xf]
        %v1213 = vld [vmem:[%s1200 + $0x30] sm:$0xf]
        %v1214 = vld [vmem:[%s1200 + $0x34] sm:$0xf]
        %v1215 = vld [vmem:[%s1200 + $0x38] sm:$0xf]
        %v1216 = vld [vmem:[%s1200 + $0x3c] sm:$0xf]
        %v1225 = vunpack.c.l.b16 %v1192
        %v1226 = vunpack.c.l.b16 %v1193
        %v1227 = vunpack.c.l.b16 %v1194
        %v1228 = vunpack.c.l.b16 %v1195
        %v1229 = vunpack.c.l.b16 %v1196
        %v1230 = vunpack.c.l.b16 %v1197
        %v1231 = vunpack.c.l.b16 %v1198
        %v1232 = vunpack.c.l.b16 %v1199
        %v1233 = vpack.c.b16 %v1226, %v1225
        %v1234 = vpack.c.b16 %v1228, %v1227
        %v1235 = vpack.c.b16 %v1230, %v1229
        %v1236 = vpack.c.b16 %v1232, %v1231
        %v1257 = vunpack.c.l.b16 %v1201
        %v1258 = vunpack.c.l.b16 %v1202
        %v1259 = vunpack.c.l.b16 %v1203
        %v1260 = vunpack.c.l.b16 %v1204
        %v1261 = vunpack.c.l.b16 %v1205
        %v1262 = vunpack.c.l.b16 %v1206
        %v1263 = vunpack.c.l.b16 %v1207
        %v1264 = vunpack.c.l.b16 %v1208
        %v1265 = vunpack.c.l.b16 %v1209
        %v1266 = vunpack.c.l.b16 %v1210
        %v1267 = vunpack.c.l.b16 %v1211
        %v1268 = vunpack.c.l.b16 %v1212
        %v1269 = vunpack.c.l.b16 %v1213
        %v1270 = vunpack.c.l.b16 %v1214
        %v1271 = vunpack.c.l.b16 %v1215
        %v1272 = vunpack.c.l.b16 %v1216
        %v1273 = vpack.c.b16 %v1258, %v1257
        %v1274 = vpack.c.b16 %v1260, %v1259
        %v1275 = vpack.c.b16 %v1262, %v1261
        %v1276 = vpack.c.b16 %v1264, %v1263
        %v1277 = vpack.c.b16 %v1266, %v1265
        %v1278 = vpack.c.b16 %v1268, %v1267
        %v1279 = vpack.c.b16 %v1270, %v1269
        %v1280 = vpack.c.b16 %v1272, %v1271
        %1289 = vmatprep.subr.bf16.mxu0 0
        %1290 = vmatpush1.bf16.msra.mxu0 %v1273
        %1291 = vmatprep.subr.bf16.mxu0 0
        %1292 = vmatpush1.bf16.msra.mxu0 %v1274
        %1293 = vmatprep.subr.bf16.mxu0 0
        %1294 = vmatpush1.bf16.msra.mxu0 %v1275
        %1295 = vmatprep.subr.bf16.mxu0 0
        %1296 = vmatpush1.bf16.msra.mxu0 %v1276
        %1297 = vmatprep.subr.bf16.mxu0 0
        %1298 = vmatpush1.bf16.msra.mxu0 %v1277
        %1299 = vmatprep.subr.bf16.mxu0 0
        %1300 = vmatpush1.bf16.msra.mxu0 %v1278
        %1301 = vmatprep.subr.bf16.mxu0 0
        %1302 = vmatpush1.bf16.msra.mxu0 %v1279
        %1303 = vmatprep.subr.bf16.mxu0 0
        %1304 = vmatpush1.bf16.msra.mxu0 %v1280
        %1305 = vmatprep.subr.bf16.mxu0 0
        %1306 = vmatpush1.bf16.msra.mxu0 0
        %1307 = vmatprep.subr.bf16.mxu0 0
        %1308 = vmatpush1.bf16.msra.mxu0 0
        %1309 = vmatprep.subr.bf16.mxu0 0
        %1310 = vmatpush1.bf16.msra.mxu0 0
        %1311 = vmatprep.subr.bf16.mxu0 0
        %1312 = vmatpush1.bf16.msra.mxu0 0
        %1313 = vmatprep.subr.bf16.mxu0 0
        %1314 = vmatpush1.bf16.msra.mxu0 0
        %1315 = vmatprep.subr.bf16.mxu0 0
        %1316 = vmatpush1.bf16.msra.mxu0 0
        %1317 = vmatprep.subr.bf16.mxu0 0
        %1318 = vmatpush1.bf16.msra.mxu0 0
        %1319 = vmatprep.subr.bf16.mxu0 0
        %1320 = vmatpush1.bf16.msra.mxu0 0
        %1321 = vmatprep.mubr.bf16.mxu0 0
        %1322 = vmatmul.mubr.bf16.gmra.mrb[0].mxu0 %v1233
        %v1323 = vpop.f32.mrb[0].mxu0
        %v1324 = vadd.f32 0.0, %v1323
        %v1325 = vpop.f32.mrb[0].mxu0
        %v1326 = vpop.f32.mrb[0].mxu0
        %v1327 = vadd.f32 0.0, %v1326
        %v1328 = vpop.f32.mrb[0].mxu0
        %1329 = vmatprep.mubr.bf16.mxu0 0
        %1330 = vmatmul.mubr.bf16.gmra.mrb[0].mxu0 %v1234
        %v1331 = vpop.f32.mrb[0].mxu0
        %v1332 = vadd.f32 0.0, %v1331
        %v1333 = vpop.f32.mrb[0].mxu0
        %v1334 = vpop.f32.mrb[0].mxu0
        %v1335 = vadd.f32 0.0, %v1334
        %v1336 = vpop.f32.mrb[0].mxu0
        %1337 = vmatprep.mubr.bf16.mxu0 0
        %1338 = vmatmul.mubr.bf16.gmra.mrb[0].mxu0 %v1235
        %v1339 = vpop.f32.mrb[0].mxu0
        %v1340 = vadd.f32 0.0, %v1339
        %v1341 = vpop.f32.mrb[0].mxu0
        %v1342 = vpop.f32.mrb[0].mxu0
        %v1343 = vadd.f32 0.0, %v1342
        %v1344 = vpop.f32.mrb[0].mxu0
        %1345 = vmatprep.mubr.bf16.mxu0 0
        %1346 = vmatmul.mubr.bf16.gmra.mrb[0].mxu0 %v1236
        %v1347 = vpop.f32.mrb[0].mxu0
        %v1348 = vadd.f32 0.0, %v1347
        %v1349 = vpop.f32.mrb[0].mxu0
        %v1350 = vpop.f32.mrb[0].mxu0
        %v1351 = vadd.f32 0.0, %v1350
        %v1352 = vpop.f32.mrb[0].mxu0
        %1353 = vdwg.mxu0
        %v1354 = vadd.f32 %v1183, %v1324
        %v1355 = vadd.f32 %v1184, %v1327
        %v1356 = vadd.f32 %v1185, %v1332
        %v1357 = vadd.f32 %v1186, %v1335
        %v1358 = vadd.f32 %v1187, %v1340
        %v1359 = vadd.f32 %v1188, %v1343
        %v1360 = vadd.f32 %v1189, %v1348
        %v1361 = vadd.f32 %v1190, %v1351
        %s1362 = scalar_lea.vmem %s499, 160 [#allocation2]
        %v1363 = vld [vmem:[%s1362] sm:$0xf]
        %v1364 = vld [vmem:[%s1362 + $0x4] sm:$0xf]
        %v1365 = vld [vmem:[%s1362 + $0x8] sm:$0xf]
        %v1366 = vld [vmem:[%s1362 + $0xc] sm:$0xf]
        %v1367 = vld [vmem:[%s1362 + $0x10] sm:$0xf]
        %v1368 = vld [vmem:[%s1362 + $0x14] sm:$0xf]
        %v1369 = vld [vmem:[%s1362 + $0x18] sm:$0xf]
        %v1370 = vld [vmem:[%s1362 + $0x1c] sm:$0xf]
        %s1371 = scalar_lea.vmem %s1, 320
        %v1372 = vld [vmem:[%s1371] sm:$0xf]
        %v1373 = vld [vmem:[%s1371 + $0x4] sm:$0xf]
        %v1374 = vld [vmem:[%s1371 + $0x8] sm:$0xf]
        %v1375 = vld [vmem:[%s1371 + $0xc] sm:$0xf]
        %v1376 = vld [vmem:[%s1371 + $0x10] sm:$0xf]
        %v1377 = vld [vmem:[%s1371 + $0x14] sm:$0xf]
        %v1378 = vld [vmem:[%s1371 + $0x18] sm:$0xf]
        %v1379 = vld [vmem:[%s1371 + $0x1c] sm:$0xf]
        %v1380 = vld [vmem:[%s1371 + $0x20] sm:$0xf]
        %v1381 = vld [vmem:[%s1371 + $0x24] sm:$0xf]
        %v1382 = vld [vmem:[%s1371 + $0x28] sm:$0xf]
        %v1383 = vld [vmem:[%s1371 + $0x2c] sm:$0xf]
        %v1384 = vld [vmem:[%s1371 + $0x30] sm:$0xf]
        %v1385 = vld [vmem:[%s1371 + $0x34] sm:$0xf]
        %v1386 = vld [vmem:[%s1371 + $0x38] sm:$0xf]
        %v1387 = vld [vmem:[%s1371 + $0x3c] sm:$0xf]
        %v1396 = vunpack.c.l.b16 %v1363
        %v1397 = vunpack.c.l.b16 %v1364
        %v1398 = vunpack.c.l.b16 %v1365
        %v1399 = vunpack.c.l.b16 %v1366
        %v1400 = vunpack.c.l.b16 %v1367
        %v1401 = vunpack.c.l.b16 %v1368
        %v1402 = vunpack.c.l.b16 %v1369
        %v1403 = vunpack.c.l.b16 %v1370
        %v1404 = vpack.c.b16 %v1397, %v1396
        %v1405 = vpack.c.b16 %v1399, %v1398
        %v1406 = vpack.c.b16 %v1401, %v1400
        %v1407 = vpack.c.b16 %v1403, %v1402
        %v1428 = vunpack.c.l.b16 %v1372
        %v1429 = vunpack.c.l.b16 %v1373
        %v1430 = vunpack.c.l.b16 %v1374
        %v1431 = vunpack.c.l.b16 %v1375
        %v1432 = vunpack.c.l.b16 %v1376
        %v1433 = vunpack.c.l.b16 %v1377
        %v1434 = vunpack.c.l.b16 %v1378
        %v1435 = vunpack.c.l.b16 %v1379
        %v1436 = vunpack.c.l.b16 %v1380
        %v1437 = vunpack.c.l.b16 %v1381
        %v1438 = vunpack.c.l.b16 %v1382
        %v1439 = vunpack.c.l.b16 %v1383
        %v1440 = vunpack.c.l.b16 %v1384
        %v1441 = vunpack.c.l.b16 %v1385
        %v1442 = vunpack.c.l.b16 %v1386
        %v1443 = vunpack.c.l.b16 %v1387
        %v1444 = vpack.c.b16 %v1429, %v1428
        %v1445 = vpack.c.b16 %v1431, %v1430
        %v1446 = vpack.c.b16 %v1433, %v1432
        %v1447 = vpack.c.b16 %v1435, %v1434
        %v1448 = vpack.c.b16 %v1437, %v1436
        %v1449 = vpack.c.b16 %v1439, %v1438
        %v1450 = vpack.c.b16 %v1441, %v1440
        %v1451 = vpack.c.b16 %v1443, %v1442
        %1460 = vmatprep.subr.bf16.mxu0 0
        %1461 = vmatpush1.bf16.msra.mxu0 %v1444
        %1462 = vmatprep.subr.bf16.mxu0 0
        %1463 = vmatpush1.bf16.msra.mxu0 %v1445
        %1464 = vmatprep.subr.bf16.mxu0 0
        %1465 = vmatpush1.bf16.msra.mxu0 %v1446
        %1466 = vmatprep.subr.bf16.mxu0 0
        %1467 = vmatpush1.bf16.msra.mxu0 %v1447
        %1468 = vmatprep.subr.bf16.mxu0 0
        %1469 = vmatpush1.bf16.msra.mxu0 %v1448
        %1470 = vmatprep.subr.bf16.mxu0 0
        %1471 = vmatpush1.bf16.msra.mxu0 %v1449
        %1472 = vmatprep.subr.bf16.mxu0 0
        %1473 = vmatpush1.bf16.msra.mxu0 %v1450
        %1474 = vmatprep.subr.bf16.mxu0 0
        %1475 = vmatpush1.bf16.msra.mxu0 %v1451
        %1476 = vmatprep.subr.bf16.mxu0 0
        %1477 = vmatpush1.bf16.msra.mxu0 0
        %1478 = vmatprep.subr.bf16.mxu0 0
        %1479 = vmatpush1.bf16.msra.mxu0 0
        %1480 = vmatprep.subr.bf16.mxu0 0
        %1481 = vmatpush1.bf16.msra.mxu0 0
        %1482 = vmatprep.subr.bf16.mxu0 0
        %1483 = vmatpush1.bf16.msra.mxu0 0
        %1484 = vmatprep.subr.bf16.mxu0 0
        %1485 = vmatpush1.bf16.msra.mxu0 0
        %1486 = vmatprep.subr.bf16.mxu0 0
        %1487 = vmatpush1.bf16.msra.mxu0 0
        %1488 = vmatprep.subr.bf16.mxu0 0
        %1489 = vmatpush1.bf16.msra.mxu0 0
        %1490 = vmatprep.subr.bf16.mxu0 0
        %1491 = vmatpush1.bf16.msra.mxu0 0
        %1492 = vmatprep.mubr.bf16.mxu0 0
        %1493 = vmatmul.mubr.bf16.gmra.mrb[0].mxu0 %v1404
        %v1494 = vpop.f32.mrb[0].mxu0
        %v1495 = vadd.f32 0.0, %v1494
        %v1496 = vpop.f32.mrb[0].mxu0
        %v1497 = vpop.f32.mrb[0].mxu0
        %v1498 = vadd.f32 0.0, %v1497
        %v1499 = vpop.f32.mrb[0].mxu0
        %1500 = vmatprep.mubr.bf16.mxu0 0
        %1501 = vmatmul.mubr.bf16.gmra.mrb[0].mxu0 %v1405
        %v1502 = vpop.f32.mrb[0].mxu0
        %v1503 = vadd.f32 0.0, %v1502
        %v1504 = vpop.f32.mrb[0].mxu0
        %v1505 = vpop.f32.mrb[0].mxu0
        %v1506 = vadd.f32 0.0, %v1505
        %v1507 = vpop.f32.mrb[0].mxu0
        %1508 = vmatprep.mubr.bf16.mxu0 0
        %1509 = vmatmul.mubr.bf16.gmra.mrb[0].mxu0 %v1406
        %v1510 = vpop.f32.mrb[0].mxu0
        %v1511 = vadd.f32 0.0, %v1510
        %v1512 = vpop.f32.mrb[0].mxu0
        %v1513 = vpop.f32.mrb[0].mxu0
        %v1514 = vadd.f32 0.0, %v1513
        %v1515 = vpop.f32.mrb[0].mxu0
        %1516 = vmatprep.mubr.bf16.mxu0 0
        %1517 = vmatmul.mubr.bf16.gmra.mrb[0].mxu0 %v1407
        %v1518 = vpop.f32.mrb[0].mxu0
        %v1519 = vadd.f32 0.0, %v1518
        %v1520 = vpop.f32.mrb[0].mxu0
        %v1521 = vpop.f32.mrb[0].mxu0
        %v1522 = vadd.f32 0.0, %v1521
        %v1523 = vpop.f32.mrb[0].mxu0
        %1524 = vdwg.mxu0
        %v1525 = vadd.f32 %v1354, %v1495
        %v1526 = vadd.f32 %v1355, %v1498
        %v1527 = vadd.f32 %v1356, %v1503
        %v1528 = vadd.f32 %v1357, %v1506
        %v1529 = vadd.f32 %v1358, %v1511
        %v1530 = vadd.f32 %v1359, %v1514
        %v1531 = vadd.f32 %v1360, %v1519
        %v1532 = vadd.f32 %v1361, %v1522
        %s1533 = scalar_lea.vmem %s499, 192 [#allocation2]
        %v1534 = vld [vmem:[%s1533] sm:$0xf]
        %v1535 = vld [vmem:[%s1533 + $0x4] sm:$0xf]
        %v1536 = vld [vmem:[%s1533 + $0x8] sm:$0xf]
        %v1537 = vld [vmem:[%s1533 + $0xc] sm:$0xf]
        %v1538 = vld [vmem:[%s1533 + $0x10] sm:$0xf]
        %v1539 = vld [vmem:[%s1533 + $0x14] sm:$0xf]
        %v1540 = vld [vmem:[%s1533 + $0x18] sm:$0xf]
        %v1541 = vld [vmem:[%s1533 + $0x1c] sm:$0xf]
        %s1542 = scalar_lea.vmem %s1, 384
        %v1543 = vld [vmem:[%s1542] sm:$0xf]
        %v1544 = vld [vmem:[%s1542 + $0x4] sm:$0xf]
        %v1545 = vld [vmem:[%s1542 + $0x8] sm:$0xf]
        %v1546 = vld [vmem:[%s1542 + $0xc] sm:$0xf]
        %v1547 = vld [vmem:[%s1542 + $0x10] sm:$0xf]
        %v1548 = vld [vmem:[%s1542 + $0x14] sm:$0xf]
        %v1549 = vld [vmem:[%s1542 + $0x18] sm:$0xf]
        %v1550 = vld [vmem:[%s1542 + $0x1c] sm:$0xf]
        %v1551 = vld [vmem:[%s1542 + $0x20] sm:$0xf]
        %v1552 = vld [vmem:[%s1542 + $0x24] sm:$0xf]
        %v1553 = vld [vmem:[%s1542 + $0x28] sm:$0xf]
        %v1554 = vld [vmem:[%s1542 + $0x2c] sm:$0xf]
        %v1555 = vld [vmem:[%s1542 + $0x30] sm:$0xf]
        %v1556 = vld [vmem:[%s1542 + $0x34] sm:$0xf]
        %v1557 = vld [vmem:[%s1542 + $0x38] sm:$0xf]
        %v1558 = vld [vmem:[%s1542 + $0x3c] sm:$0xf]
        %v1567 = vunpack.c.l.b16 %v1534
        %v1568 = vunpack.c.l.b16 %v1535
        %v1569 = vunpack.c.l.b16 %v1536
        %v1570 = vunpack.c.l.b16 %v1537
        %v1571 = vunpack.c.l.b16 %v1538
        %v1572 = vunpack.c.l.b16 %v1539
        %v1573 = vunpack.c.l.b16 %v1540
        %v1574 = vunpack.c.l.b16 %v1541
        %v1575 = vpack.c.b16 %v1568, %v1567
        %v1576 = vpack.c.b16 %v1570, %v1569
        %v1577 = vpack.c.b16 %v1572, %v1571
        %v1578 = vpack.c.b16 %v1574, %v1573
        %v1599 = vunpack.c.l.b16 %v1543
        %v1600 = vunpack.c.l.b16 %v1544
        %v1601 = vunpack.c.l.b16 %v1545
        %v1602 = vunpack.c.l.b16 %v1546
        %v1603 = vunpack.c.l.b16 %v1547
        %v1604 = vunpack.c.l.b16 %v1548
        %v1605 = vunpack.c.l.b16 %v1549
        %v1606 = vunpack.c.l.b16 %v1550
        %v1607 = vunpack.c.l.b16 %v1551
        %v1608 = vunpack.c.l.b16 %v1552
        %v1609 = vunpack.c.l.b16 %v1553
        %v1610 = vunpack.c.l.b16 %v1554
        %v1611 = vunpack.c.l.b16 %v1555
        %v1612 = vunpack.c.l.b16 %v1556
        %v1613 = vunpack.c.l.b16 %v1557
        %v1614 = vunpack.c.l.b16 %v1558
        %v1615 = vpack.c.b16 %v1600, %v1599
        %v1616 = vpack.c.b16 %v1602, %v1601
        %v1617 = vpack.c.b16 %v1604, %v1603
        %v1618 = vpack.c.b16 %v1606, %v1605
        %v1619 = vpack.c.b16 %v1608, %v1607
        %v1620 = vpack.c.b16 %v1610, %v1609
        %v1621 = vpack.c.b16 %v1612, %v1611
        %v1622 = vpack.c.b16 %v1614, %v1613
        %1631 = vmatprep.subr.bf16.mxu0 0
        %1632 = vmatpush1.bf16.msra.mxu0 %v1615
        %1633 = vmatprep.subr.bf16.mxu0 0
        %1634 = vmatpush1.bf16.msra.mxu0 %v1616
        %1635 = vmatprep.subr.bf16.mxu0 0
        %1636 = vmatpush1.bf16.msra.mxu0 %v1617
        %1637 = vmatprep.subr.bf16.mxu0 0
        %1638 = vmatpush1.bf16.msra.mxu0 %v1618
        %1639 = vmatprep.subr.bf16.mxu0 0
        %1640 = vmatpush1.bf16.msra.mxu0 %v1619
        %1641 = vmatprep.subr.bf16.mxu0 0
        %1642 = vmatpush1.bf16.msra.mxu0 %v1620
        %1643 = vmatprep.subr.bf16.mxu0 0
        %1644 = vmatpush1.bf16.msra.mxu0 %v1621
        %1645 = vmatprep.subr.bf16.mxu0 0
        %1646 = vmatpush1.bf16.msra.mxu0 %v1622
        %1647 = vmatprep.subr.bf16.mxu0 0
        %1648 = vmatpush1.bf16.msra.mxu0 0
        %1649 = vmatprep.subr.bf16.mxu0 0
        %1650 = vmatpush1.bf16.msra.mxu0 0
        %1651 = vmatprep.subr.bf16.mxu0 0
        %1652 = vmatpush1.bf16.msra.mxu0 0
        %1653 = vmatprep.subr.bf16.mxu0 0
        %1654 = vmatpush1.bf16.msra.mxu0 0
        %1655 = vmatprep.subr.bf16.mxu0 0
        %1656 = vmatpush1.bf16.msra.mxu0 0
        %1657 = vmatprep.subr.bf16.mxu0 0
        %1658 = vmatpush1.bf16.msra.mxu0 0
        %1659 = vmatprep.subr.bf16.mxu0 0
        %1660 = vmatpush1.bf16.msra.mxu0 0
        %1661 = vmatprep.subr.bf16.mxu0 0
        %1662 = vmatpush1.bf16.msra.mxu0 0
        %1663 = vmatprep.mubr.bf16.mxu0 0
        %1664 = vmatmul.mubr.bf16.gmra.mrb[0].mxu0 %v1575
        %v1665 = vpop.f32.mrb[0].mxu0
        %v1666 = vadd.f32 0.0, %v1665
        %v1667 = vpop.f32.mrb[0].mxu0
        %v1668 = vpop.f32.mrb[0].mxu0
        %v1669 = vadd.f32 0.0, %v1668
        %v1670 = vpop.f32.mrb[0].mxu0
        %1671 = vmatprep.mubr.bf16.mxu0 0
        %1672 = vmatmul.mubr.bf16.gmra.mrb[0].mxu0 %v1576
        %v1673 = vpop.f32.mrb[0].mxu0
        %v1674 = vadd.f32 0.0, %v1673
        %v1675 = vpop.f32.mrb[0].mxu0
        %v1676 = vpop.f32.mrb[0].mxu0
        %v1677 = vadd.f32 0.0, %v1676
        %v1678 = vpop.f32.mrb[0].mxu0
        %1679 = vmatprep.mubr.bf16.mxu0 0
        %1680 = vmatmul.mubr.bf16.gmra.mrb[0].mxu0 %v1577
        %v1681 = vpop.f32.mrb[0].mxu0
        %v1682 = vadd.f32 0.0, %v1681
        %v1683 = vpop.f32.mrb[0].mxu0
        %v1684 = vpop.f32.mrb[0].mxu0
        %v1685 = vadd.f32 0.0, %v1684
        %v1686 = vpop.f32.mrb[0].mxu0
        %1687 = vmatprep.mubr.bf16.mxu0 0
        %1688 = vmatmul.mubr.bf16.gmra.mrb[0].mxu0 %v1578
        %v1689 = vpop.f32.mrb[0].mxu0
        %v1690 = vadd.f32 0.0, %v1689
        %v1691 = vpop.f32.mrb[0].mxu0
        %v1692 = vpop.f32.mrb[0].mxu0
        %v1693 = vadd.f32 0.0, %v1692
        %v1694 = vpop.f32.mrb[0].mxu0
        %1695 = vdwg.mxu0
        %v1696 = vadd.f32 %v1525, %v1666
        %v1697 = vadd.f32 %v1526, %v1669
        %v1698 = vadd.f32 %v1527, %v1674
        %v1699 = vadd.f32 %v1528, %v1677
        %v1700 = vadd.f32 %v1529, %v1682
        %v1701 = vadd.f32 %v1530, %v1685
        %v1702 = vadd.f32 %v1531, %v1690
        %v1703 = vadd.f32 %v1532, %v1693
        %s1704 = scalar_lea.vmem %s499, 224 [#allocation2]
        %v1705 = vld [vmem:[%s1704] sm:$0xf]
        %v1706 = vld [vmem:[%s1704 + $0x4] sm:$0xf]
        %v1707 = vld [vmem:[%s1704 + $0x8] sm:$0xf]
        %v1708 = vld [vmem:[%s1704 + $0xc] sm:$0xf]
        %v1709 = vld [vmem:[%s1704 + $0x10] sm:$0xf]
        %v1710 = vld [vmem:[%s1704 + $0x14] sm:$0xf]
        %v1711 = vld [vmem:[%s1704 + $0x18] sm:$0xf]
        %v1712 = vld [vmem:[%s1704 + $0x1c] sm:$0xf]
        %s1713 = scalar_lea.vmem %s1, 448
        %v1714 = vld [vmem:[%s1713] sm:$0xf]
        %v1715 = vld [vmem:[%s1713 + $0x4] sm:$0xf]
        %v1716 = vld [vmem:[%s1713 + $0x8] sm:$0xf]
        %v1717 = vld [vmem:[%s1713 + $0xc] sm:$0xf]
        %v1718 = vld [vmem:[%s1713 + $0x10] sm:$0xf]
        %v1719 = vld [vmem:[%s1713 + $0x14] sm:$0xf]
        %v1720 = vld [vmem:[%s1713 + $0x18] sm:$0xf]
        %v1721 = vld [vmem:[%s1713 + $0x1c] sm:$0xf]
        %v1722 = vld [vmem:[%s1713 + $0x20] sm:$0xf]
        %v1723 = vld [vmem:[%s1713 + $0x24] sm:$0xf]
        %v1724 = vld [vmem:[%s1713 + $0x28] sm:$0xf]
        %v1725 = vld [vmem:[%s1713 + $0x2c] sm:$0xf]
        %v1726 = vld [vmem:[%s1713 + $0x30] sm:$0xf]
        %v1727 = vld [vmem:[%s1713 + $0x34] sm:$0xf]
        %v1728 = vld [vmem:[%s1713 + $0x38] sm:$0xf]
        %v1729 = vld [vmem:[%s1713 + $0x3c] sm:$0xf]
        %v1738 = vunpack.c.l.b16 %v1705
        %v1739 = vunpack.c.l.b16 %v1706
        %v1740 = vunpack.c.l.b16 %v1707
        %v1741 = vunpack.c.l.b16 %v1708
        %v1742 = vunpack.c.l.b16 %v1709
        %v1743 = vunpack.c.l.b16 %v1710
        %v1744 = vunpack.c.l.b16 %v1711
        %v1745 = vunpack.c.l.b16 %v1712
        %v1746 = vpack.c.b16 %v1739, %v1738
        %v1747 = vpack.c.b16 %v1741, %v1740
        %v1748 = vpack.c.b16 %v1743, %v1742
        %v1749 = vpack.c.b16 %v1745, %v1744
        %v1770 = vunpack.c.l.b16 %v1714
        %v1771 = vunpack.c.l.b16 %v1715
        %v1772 = vunpack.c.l.b16 %v1716
        %v1773 = vunpack.c.l.b16 %v1717
        %v1774 = vunpack.c.l.b16 %v1718
        %v1775 = vunpack.c.l.b16 %v1719
        %v1776 = vunpack.c.l.b16 %v1720
        %v1777 = vunpack.c.l.b16 %v1721
        %v1778 = vunpack.c.l.b16 %v1722
        %v1779 = vunpack.c.l.b16 %v1723
        %v1780 = vunpack.c.l.b16 %v1724
        %v1781 = vunpack.c.l.b16 %v1725
        %v1782 = vunpack.c.l.b16 %v1726
        %v1783 = vunpack.c.l.b16 %v1727
        %v1784 = vunpack.c.l.b16 %v1728
        %v1785 = vunpack.c.l.b16 %v1729
        %v1786 = vpack.c.b16 %v1771, %v1770
        %v1787 = vpack.c.b16 %v1773, %v1772
        %v1788 = vpack.c.b16 %v1775, %v1774
        %v1789 = vpack.c.b16 %v1777, %v1776
        %v1790 = vpack.c.b16 %v1779, %v1778
        %v1791 = vpack.c.b16 %v1781, %v1780
        %v1792 = vpack.c.b16 %v1783, %v1782
        %v1793 = vpack.c.b16 %v1785, %v1784
        %1802 = vmatprep.subr.bf16.mxu0 0
        %1803 = vmatpush1.bf16.msra.mxu0 %v1786
        %1804 = vmatprep.subr.bf16.mxu0 0
        %1805 = vmatpush1.bf16.msra.mxu0 %v1787
        %1806 = vmatprep.subr.bf16.mxu0 0
        %1807 = vmatpush1.bf16.msra.mxu0 %v1788
        %1808 = vmatprep.subr.bf16.mxu0 0
        %1809 = vmatpush1.bf16.msra.mxu0 %v1789
        %1810 = vmatprep.subr.bf16.mxu0 0
        %1811 = vmatpush1.bf16.msra.mxu0 %v1790
        %1812 = vmatprep.subr.bf16.mxu0 0
        %1813 = vmatpush1.bf16.msra.mxu0 %v1791
        %1814 = vmatprep.subr.bf16.mxu0 0
        %1815 = vmatpush1.bf16.msra.mxu0 %v1792
        %1816 = vmatprep.subr.bf16.mxu0 0
        %1817 = vmatpush1.bf16.msra.mxu0 %v1793
        %1818 = vmatprep.subr.bf16.mxu0 0
        %1819 = vmatpush1.bf16.msra.mxu0 0
        %1820 = vmatprep.subr.bf16.mxu0 0
        %1821 = vmatpush1.bf16.msra.mxu0 0
        %1822 = vmatprep.subr.bf16.mxu0 0
        %1823 = vmatpush1.bf16.msra.mxu0 0
        %1824 = vmatprep.subr.bf16.mxu0 0
        %1825 = vmatpush1.bf16.msra.mxu0 0
        %1826 = vmatprep.subr.bf16.mxu0 0
        %1827 = vmatpush1.bf16.msra.mxu0 0
        %1828 = vmatprep.subr.bf16.mxu0 0
        %1829 = vmatpush1.bf16.msra.mxu0 0
        %1830 = vmatprep.subr.bf16.mxu0 0
        %1831 = vmatpush1.bf16.msra.mxu0 0
        %1832 = vmatprep.subr.bf16.mxu0 0
        %1833 = vmatpush1.bf16.msra.mxu0 0
        %1834 = vmatprep.mubr.bf16.mxu0 0
        %1835 = vmatmul.mubr.bf16.gmra.mrb[0].mxu0 %v1746
        %v1836 = vpop.f32.mrb[0].mxu0
        %v1837 = vadd.f32 0.0, %v1836
        %v1838 = vpop.f32.mrb[0].mxu0
        %v1839 = vpop.f32.mrb[0].mxu0
        %v1840 = vadd.f32 0.0, %v1839
        %v1841 = vpop.f32.mrb[0].mxu0
        %1842 = vmatprep.mubr.bf16.mxu0 0
        %1843 = vmatmul.mubr.bf16.gmra.mrb[0].mxu0 %v1747
        %v1844 = vpop.f32.mrb[0].mxu0
        %v1845 = vadd.f32 0.0, %v1844
        %v1846 = vpop.f32.mrb[0].mxu0
        %v1847 = vpop.f32.mrb[0].mxu0
        %v1848 = vadd.f32 0.0, %v1847
        %v1849 = vpop.f32.mrb[0].mxu0
        %1850 = vmatprep.mubr.bf16.mxu0 0
        %1851 = vmatmul.mubr.bf16.gmra.mrb[0].mxu0 %v1748
        %v1852 = vpop.f32.mrb[0].mxu0
        %v1853 = vadd.f32 0.0, %v1852
        %v1854 = vpop.f32.mrb[0].mxu0
        %v1855 = vpop.f32.mrb[0].mxu0
        %v1856 = vadd.f32 0.0, %v1855
        %v1857 = vpop.f32.mrb[0].mxu0
        %1858 = vmatprep.mubr.bf16.mxu0 0
        %1859 = vmatmul.mubr.bf16.gmra.mrb[0].mxu0 %v1749
        %v1860 = vpop.f32.mrb[0].mxu0
        %v1861 = vadd.f32 0.0, %v1860
        %v1862 = vpop.f32.mrb[0].mxu0
        %v1863 = vpop.f32.mrb[0].mxu0
        %v1864 = vadd.f32 0.0, %v1863
        %v1865 = vpop.f32.mrb[0].mxu0
        %1866 = vdwg.mxu0
        %v1867 = vadd.f32 %v1696, %v1837
        %v1868 = vadd.f32 %v1697, %v1840
        %v1869 = vadd.f32 %v1698, %v1845
        %v1870 = vadd.f32 %v1699, %v1848
        %v1871 = vadd.f32 %v1700, %v1853
        %v1872 = vadd.f32 %v1701, %v1856
        %v1873 = vadd.f32 %v1702, %v1861
        %v1874 = vadd.f32 %v1703, %v1864
        %s1875 = scalar_lea.vmem %s499, 256 [#allocation2]
        %v1876 = vld [vmem:[%s1875] sm:$0xf]
        %v1877 = vld [vmem:[%s1875 + $0x4] sm:$0xf]
        %v1878 = vld [vmem:[%s1875 + $0x8] sm:$0xf]
        %v1879 = vld [vmem:[%s1875 + $0xc] sm:$0xf]
        %v1880 = vld [vmem:[%s1875 + $0x10] sm:$0xf]
        %v1881 = vld [vmem:[%s1875 + $0x14] sm:$0xf]
        %v1882 = vld [vmem:[%s1875 + $0x18] sm:$0xf]
        %v1883 = vld [vmem:[%s1875 + $0x1c] sm:$0xf]
        %s1884 = scalar_lea.vmem %s1, 512
        %v1885 = vld [vmem:[%s1884] sm:$0xf]
        %v1886 = vld [vmem:[%s1884 + $0x4] sm:$0xf]
        %v1887 = vld [vmem:[%s1884 + $0x8] sm:$0xf]
        %v1888 = vld [vmem:[%s1884 + $0xc] sm:$0xf]
        %v1889 = vld [vmem:[%s1884 + $0x10] sm:$0xf]
        %v1890 = vld [vmem:[%s1884 + $0x14] sm:$0xf]
        %v1891 = vld [vmem:[%s1884 + $0x18] sm:$0xf]
        %v1892 = vld [vmem:[%s1884 + $0x1c] sm:$0xf]
        %v1893 = vld [vmem:[%s1884 + $0x20] sm:$0xf]
        %v1894 = vld [vmem:[%s1884 + $0x24] sm:$0xf]
        %v1895 = vld [vmem:[%s1884 + $0x28] sm:$0xf]
        %v1896 = vld [vmem:[%s1884 + $0x2c] sm:$0xf]
        %v1897 = vld [vmem:[%s1884 + $0x30] sm:$0xf]
        %v1898 = vld [vmem:[%s1884 + $0x34] sm:$0xf]
        %v1899 = vld [vmem:[%s1884 + $0x38] sm:$0xf]
        %v1900 = vld [vmem:[%s1884 + $0x3c] sm:$0xf]
        %v1909 = vunpack.c.l.b16 %v1876
        %v1910 = vunpack.c.l.b16 %v1877
        %v1911 = vunpack.c.l.b16 %v1878
        %v1912 = vunpack.c.l.b16 %v1879
        %v1913 = vunpack.c.l.b16 %v1880
        %v1914 = vunpack.c.l.b16 %v1881
        %v1915 = vunpack.c.l.b16 %v1882
        %v1916 = vunpack.c.l.b16 %v1883
        %v1917 = vpack.c.b16 %v1910, %v1909
        %v1918 = vpack.c.b16 %v1912, %v1911
        %v1919 = vpack.c.b16 %v1914, %v1913
        %v1920 = vpack.c.b16 %v1916, %v1915
        %v1941 = vunpack.c.l.b16 %v1885
        %v1942 = vunpack.c.l.b16 %v1886
        %v1943 = vunpack.c.l.b16 %v1887
        %v1944 = vunpack.c.l.b16 %v1888
        %v1945 = vunpack.c.l.b16 %v1889
        %v1946 = vunpack.c.l.b16 %v1890
        %v1947 = vunpack.c.l.b16 %v1891
        %v1948 = vunpack.c.l.b16 %v1892
        %v1949 = vunpack.c.l.b16 %v1893
        %v1950 = vunpack.c.l.b16 %v1894
        %v1951 = vunpack.c.l.b16 %v1895
        %v1952 = vunpack.c.l.b16 %v1896
        %v1953 = vunpack.c.l.b16 %v1897
        %v1954 = vunpack.c.l.b16 %v1898
        %v1955 = vunpack.c.l.b16 %v1899
        %v1956 = vunpack.c.l.b16 %v1900
        %v1957 = vpack.c.b16 %v1942, %v1941
        %v1958 = vpack.c.b16 %v1944, %v1943
        %v1959 = vpack.c.b16 %v1946, %v1945
        %v1960 = vpack.c.b16 %v1948, %v1947
        %v1961 = vpack.c.b16 %v1950, %v1949
        %v1962 = vpack.c.b16 %v1952, %v1951
        %v1963 = vpack.c.b16 %v1954, %v1953
        %v1964 = vpack.c.b16 %v1956, %v1955
        %1973 = vmatprep.subr.bf16.mxu0 0
        %1974 = vmatpush1.bf16.msra.mxu0 %v1957
        %1975 = vmatprep.subr.bf16.mxu0 0
        %1976 = vmatpush1.bf16.msra.mxu0 %v1958
        %1977 = vmatprep.subr.bf16.mxu0 0
        %1978 = vmatpush1.bf16.msra.mxu0 %v1959
        %1979 = vmatprep.subr.bf16.mxu0 0
        %1980 = vmatpush1.bf16.msra.mxu0 %v1960
        %1981 = vmatprep.subr.bf16.mxu0 0
        %1982 = vmatpush1.bf16.msra.mxu0 %v1961
        %1983 = vmatprep.subr.bf16.mxu0 0
        %1984 = vmatpush1.bf16.msra.mxu0 %v1962
        %1985 = vmatprep.subr.bf16.mxu0 0
        %1986 = vmatpush1.bf16.msra.mxu0 %v1963
        %1987 = vmatprep.subr.bf16.mxu0 0
        %1988 = vmatpush1.bf16.msra.mxu0 %v1964
        %1989 = vmatprep.subr.bf16.mxu0 0
        %1990 = vmatpush1.bf16.msra.mxu0 0
        %1991 = vmatprep.subr.bf16.mxu0 0
        %1992 = vmatpush1.bf16.msra.mxu0 0
        %1993 = vmatprep.subr.bf16.mxu0 0
        %1994 = vmatpush1.bf16.msra.mxu0 0
        %1995 = vmatprep.subr.bf16.mxu0 0
        %1996 = vmatpush1.bf16.msra.mxu0 0
        %1997 = vmatprep.subr.bf16.mxu0 0
        %1998 = vmatpush1.bf16.msra.mxu0 0
        %1999 = vmatprep.subr.bf16.mxu0 0
        %2000 = vmatpush1.bf16.msra.mxu0 0
        %2001 = vmatprep.subr.bf16.mxu0 0
        %2002 = vmatpush1.bf16.msra.mxu0 0
        %2003 = vmatprep.subr.bf16.mxu0 0
        %2004 = vmatpush1.bf16.msra.mxu0 0
        %2005 = vmatprep.mubr.bf16.mxu0 0
        %2006 = vmatmul.mubr.bf16.gmra.mrb[0].mxu0 %v1917
        %v2007 = vpop.f32.mrb[0].mxu0
        %v2008 = vadd.f32 0.0, %v2007
        %v2009 = vpop.f32.mrb[0].mxu0
        %v2010 = vpop.f32.mrb[0].mxu0
        %v2011 = vadd.f32 0.0, %v2010
        %v2012 = vpop.f32.mrb[0].mxu0
        %2013 = vmatprep.mubr.bf16.mxu0 0
        %2014 = vmatmul.mubr.bf16.gmra.mrb[0].mxu0 %v1918
        %v2015 = vpop.f32.mrb[0].mxu0
        %v2016 = vadd.f32 0.0, %v2015
        %v2017 = vpop.f32.mrb[0].mxu0
        %v2018 = vpop.f32.mrb[0].mxu0
        %v2019 = vadd.f32 0.0, %v2018
        %v2020 = vpop.f32.mrb[0].mxu0
        %2021 = vmatprep.mubr.bf16.mxu0 0
        %2022 = vmatmul.mubr.bf16.gmra.mrb[0].mxu0 %v1919
        %v2023 = vpop.f32.mrb[0].mxu0
        %v2024 = vadd.f32 0.0, %v2023
        %v2025 = vpop.f32.mrb[0].mxu0
        %v2026 = vpop.f32.mrb[0].mxu0
        %v2027 = vadd.f32 0.0, %v2026
        %v2028 = vpop.f32.mrb[0].mxu0
        %2029 = vmatprep.mubr.bf16.mxu0 0
        %2030 = vmatmul.mubr.bf16.gmra.mrb[0].mxu0 %v1920
        %v2031 = vpop.f32.mrb[0].mxu0
        %v2032 = vadd.f32 0.0, %v2031
        %v2033 = vpop.f32.mrb[0].mxu0
        %v2034 = vpop.f32.mrb[0].mxu0
        %v2035 = vadd.f32 0.0, %v2034
        %v2036 = vpop.f32.mrb[0].mxu0
        %2037 = vdwg.mxu0
        %v2038 = vadd.f32 %v1867, %v2008
        %v2039 = vadd.f32 %v1868, %v2011
        %v2040 = vadd.f32 %v1869, %v2016
        %v2041 = vadd.f32 %v1870, %v2019
        %v2042 = vadd.f32 %v1871, %v2024
        %v2043 = vadd.f32 %v1872, %v2027
        %v2044 = vadd.f32 %v1873, %v2032
        %v2045 = vadd.f32 %v1874, %v2035
        %v2046 = vld [vmem:[%s2] sm:$0x1]
        %v2048 = vlaneseq
        %v2049 = vshrl.u32 %v2048, 7
        %v2050 = vsub.s32 0, %v2049
        %v2051 = vrot.slane %v2046, %v2050
        %v2053 = vmul.f32 %v2038, %v2051
        %v2054 = vmul.f32 %v2039, %v2051
        %v2055 = vmul.f32 %v2040, %v2051
        %v2056 = vmul.f32 %v2041, %v2051
        %v2057 = vmul.f32 %v2042, %v2051
        %v2058 = vmul.f32 %v2043, %v2051
        %v2059 = vmul.f32 %v2044, %v2051
        %v2060 = vmul.f32 %v2045, %v2051
        %v2061 = vld [vmem:[%s3] sm:$0x1]
        %v2063 = vlaneseq
        %v2064 = vshrl.u32 %v2063, 7
        %v2065 = vsub.s32 0, %v2064
        %v2066 = vrot.slane %v2061, %v2065
        %v2068 = vadd.f32 %v2053, %v2066
        %v2069 = vadd.f32 %v2054, %v2066
        %v2070 = vadd.f32 %v2055, %v2066
        %v2071 = vadd.f32 %v2056, %v2066
        %v2072 = vadd.f32 %v2057, %v2066
        %v2073 = vadd.f32 %v2058, %v2066
        %v2074 = vadd.f32 %v2059, %v2066
        %v2075 = vadd.f32 %v2060, %v2066
        %v2076 = vmax.f32 %v2068, 0.0
        %v2077 = vmax.f32 %v2069, 0.0
        %v2078 = vmax.f32 %v2070, 0.0
        %v2079 = vmax.f32 %v2071, 0.0
        %v2080 = vmax.f32 %v2072, 0.0
        %v2081 = vmax.f32 %v2073, 0.0
        %v2082 = vmax.f32 %v2074, 0.0
        %v2083 = vmax.f32 %v2075, 0.0
        %2084 = vst [vmem:[%s521] sm:$0xff] %v2076
        %2085 = vst [vmem:[%s521 + $0x8] sm:$0xff] %v2077
        %2086 = vst [vmem:[%s521 + $0x10] sm:$0xff] %v2078
        %2087 = vst [vmem:[%s521 + $0x18] sm:$0xff] %v2079
        %2088 = vst [vmem:[%s521 + $0x20] sm:$0xff] %v2080
        %2089 = vst [vmem:[%s521 + $0x28] sm:$0xff] %v2081
        %2090 = vst [vmem:[%s521 + $0x30] sm:$0xff] %v2082
        %2091 = vst [vmem:[%s521 + $0x38] sm:$0xff] %v2083
        %s2092 = sand.u32 %s115, 1
        %s2093 = scalar_lea.sflag [#allocation4], %s2092
        %s2094 = sand.u32 %s115, 1
        %s2095 = smul.addr %s2094, 64
        %s2096 = scalar_lea.vmem [#allocation3], %s2095
        // Predicated region
        $region78: #{fwd.3} parent=72 // pred_check
          %p2097 = pneg %p125
        $region79: #{fwd.3} parent=72 // pred_check_branch
          %2099 = sbr.rel (%p2097) target = $region81
        $region80: #{fwd.3} parent=72 // pred_region
          %s2100 = smul.u32 8, %s18
          %s2102 = ssub.s32 1024, 1024
          %2103 = vsyncadd %s2093, %s2102
          %s2104 = smul.addr %s2100, 128
          %s2105 = scalar_lea.hbm %s4, %s2104
          %s2106 = sshll.u32 %s2096, 4
          %s2107 = int_to_ptr.vmem [resolvable:$true] %s2106
          %2112 = dma.vmem_to_hbm [thread:$0]  %s2107, 1024, %s2105, %s2093, 128, 128, 8
        $region81: #{fwd.3} parent=72 // pred_fallthru
          _
      $region73: #{fwd.3} parent=5 // pred_fallthru
        _
      %p2113 = scmp.le.s32.totalorder 2, %s13
      // Predicated region
      $region82: #{fwd.3} parent=5 // pred_check
        %p2114 = pneg %p2113
      $region83: #{fwd.3} parent=5 // pred_check_branch
        %2116 = sbr.rel (%p2114) target = $region85
      $region84: #{fwd.3} parent=5 // pred_region
        %s2117 = ssub.s32 %s13, 2
        // Predicated region
        $region86: #{fwd.3} parent=84 // pred_check
          %p2118 = pneg %p131
        $region87: #{fwd.3} parent=84 // pred_check_branch
          %2120 = sbr.rel (%p2118) target = $region89
        $region88: #{fwd.3} parent=84 // pred_region
          %s2121 = sand.u32 %s116, 1
          %s2122 = scalar_lea.sflag [#allocation4], %s2121
          %s2123 = sand.u32 %s116, 1
          %s2124 = smul.addr %s2123, 64
          %s2125 = scalar_lea.vmem [#allocation3], %s2124
          %2126 = dma.done %s2122, 1024
        $region89: #{fwd.3} parent=84 // pred_fallthru
          _
      $region85: #{fwd.3} parent=5 // pred_fallthru
        _
    $region6: #{fwd.3} parent=1 // loop_footer
      %s17 = sadd.s32 1, %s13
    $region7: #{fwd.3} parent=1 // loop_footer_branch
      %12 = sbr.rel target = $region3
    $region8: #{fwd.3} parent=1 // loop_exit
      _
    %2127 = vsyncpa [#allocation4], 1
    %s2128 = scalar_lea.sflag [#allocation4], 1
    %2129 = vsyncpa %s2128, 1

</llo_original>
